<compile_context>
chip_gen: v7x
topology: tpu7x:2x2x1
jax: 0.10.0
libtpu: 0.0.40
codegen_flags: <defaults>
</compile_context>

<pallas_src>
import functools

import jax
import jax.numpy as jnp
from jax import lax
from jax.experimental import pallas as pl
from jax.experimental.pallas import tpu as pltpu


# ----------------------------- kernel bodies --------------------------------

def _attention_core(q2, k2, v2, wo, bo, out_ref, attn_ref, *, B, T, S, H, hd):
    """q2: (B*T, E) f32; k2/v2: (B*S, E) f32 (batch-major rows, heads on lanes)."""
    for b in range(B):
        qr = q2[b * T:(b + 1) * T, :]
        kr = k2[b * S:(b + 1) * S, :]
        vr = v2[b * S:(b + 1) * S, :]
        for h in range(H):
            c0, c1 = h * hd, (h + 1) * hd
            qh = qr[:, c0:c1].astype(jnp.bfloat16)        # (T, hd)
            kh = kr[:, c0:c1].astype(jnp.bfloat16)        # (S, hd)
            vh = vr[:, c0:c1].astype(jnp.bfloat16)        # (S, hd)
            # s = q @ k^T, contracting last dims of both (no explicit k.T)
            s = lax.dot_general(qh, kh, (((1,), (1,)), ((), ())),
                                preferred_element_type=jnp.float32)   # (T, S)
            m = jnp.max(s, axis=-1, keepdims=True)
            p = jnp.exp(s - m)
            p = p * pl.reciprocal(jnp.sum(p, axis=-1, keepdims=True), approx=True)
            o = jnp.dot(p.astype(jnp.bfloat16), vh,
                        preferred_element_type=jnp.float32)           # (T, hd)
            attn_ref[b * T:(b + 1) * T, c0:c1] = o
    # Output projection over the lane-dense concatenated heads.
    out_ref[...] = (
        jnp.dot(attn_ref[...].astype(jnp.bfloat16), wo,
                preferred_element_type=jnp.float32) + bo
    )


def _mha_self_kernel(x_ref, wqkv_ref, bqkv_ref, wo_ref, bo_ref,
                     out_ref, attn_ref, *, B, T, H, hd):
    """Self-attention path: one fused (B*T, E) x (E, 3E) QKV matmul."""
    E = H * hd
    x = x_ref[...].astype(jnp.bfloat16)
    qkv = (jnp.dot(x, wqkv_ref[...], preferred_element_type=jnp.float32)
           + bqkv_ref[...])                                 # (B*T, 3E) f32
    q2 = qkv[:, :E]
    k2 = qkv[:, E:2 * E]
    v2 = qkv[:, 2 * E:]
    _attention_core(q2, k2, v2, wo_ref[...], bo_ref[...], out_ref, attn_ref,
                    B=B, T=T, S=T, H=H, hd=hd)


def _mha_general_kernel(xq_ref, xk_ref, xv_ref, wqkv_ref, bqkv_ref,
                        wo_ref, bo_ref, out_ref, attn_ref, *, B, T, S, H, hd):
    """General path (distinct query / key / value tensors)."""
    E = H * hd
    w = wqkv_ref[...]
    bqkv = bqkv_ref[...]
    q2 = (jnp.dot(xq_ref[...].astype(jnp.bfloat16), w[:, :E],
                  preferred_element_type=jnp.float32) + bqkv[:, :E])
    k2 = (jnp.dot(xk_ref[...].astype(jnp.bfloat16), w[:, E:2 * E],
                  preferred_element_type=jnp.float32) + bqkv[:, E:2 * E])
    v2 = (jnp.dot(xv_ref[...].astype(jnp.bfloat16), w[:, 2 * E:],
                  preferred_element_type=jnp.float32) + bqkv[:, 2 * E:])
    _attention_core(q2, k2, v2, wo_ref[...], bo_ref[...], out_ref, attn_ref,
                    B=B, T=T, S=S, H=H, hd=hd)


# ----------------------------- module wrapper --------------------------------

def init_params(key, embed_dim):
    """Matches MultiheadAttention.reset_parameters (normal std=0.02, zero bias)."""
    k1, k2 = jax.random.split(key)
    return {
        "in_proj_weight": 0.02 * jax.random.normal(k1, (3 * embed_dim, embed_dim), jnp.float32),
        "in_proj_bias":   jnp.zeros((3 * embed_dim,), jnp.float32),
        "out_proj_weight": 0.02 * jax.random.normal(k2, (embed_dim, embed_dim), jnp.float32),
        "out_proj_bias":  jnp.zeros((embed_dim,), jnp.float32),
    }


def multihead_attention(query, key, value, params, num_heads):
    """Forward pass of MultiheadAttention (need_weights=False, no masks, p=0)."""
    T, B, E = query.shape
    S = key.shape[0]
    H = num_heads
    hd = E // H
    assert hd * H == E
    scaling = hd ** (-0.5)

    W = params["in_proj_weight"]        # (3E, E); torch: y = x @ W.T + b
    b_in = params["in_proj_bias"]       # (3E,)
    Wo = params["out_proj_weight"]      # (E, E)
    bo = params["out_proj_bias"]        # (E,)

    # Fold the head_dim^-0.5 scaling into Wq / bq, transpose to the x @ W form,
    # cast weights to bf16 for the MXU (accumulation stays f32).
    wqkv_t = jnp.concatenate(
        [W[:E].T * scaling, W[E:2 * E].T, W[2 * E:].T], axis=1
    ).astype(jnp.bfloat16)                                   # (E, 3E)
    bqkv = jnp.concatenate([b_in[:E] * scaling, b_in[E:]], axis=0)
    bqkv = bqkv.reshape(1, 3 * E).astype(jnp.float32)
    wo_t = Wo.T.astype(jnp.bfloat16)                         # (E, E)
    bo2 = bo.reshape(1, E).astype(jnp.float32)

    # Batch-major, lane-dense 2-D activations: row b*T + t == query[t, b, :].
    xq = query.transpose(1, 0, 2).reshape(B * T, E)

    def full2d(a):
        return pl.BlockSpec(a.shape, lambda i: (0, 0))

    if (query is key) and (key is value):
        kernel = functools.partial(_mha_self_kernel, B=B, T=T, H=H, hd=hd)
        operands = (xq, wqkv_t, bqkv, wo_t, bo2)
    else:
        xk = key.transpose(1, 0, 2).reshape(B * S, E)
        xv = value.transpose(1, 0, 2).reshape(B * S, E)
        kernel = functools.partial(_mha_general_kernel, B=B, T=T, S=S, H=H, hd=hd)
        operands = (xq, xk, xv, wqkv_t, bqkv, wo_t, bo2)

    out2d = pl.pallas_call(
        kernel,
        out_shape=jax.ShapeDtypeStruct((B * T, E), jnp.float32),
        grid_spec=pltpu.PrefetchScalarGridSpec(
            num_scalar_prefetch=0,
            grid=(1,),
            in_specs=[full2d(a) for a in operands],
            out_specs=pl.BlockSpec((B * T, E), lambda i: (0, 0)),
            scratch_shapes=[pltpu.VMEM((B * T, E), jnp.float32)],
        ),
        compiler_params=pltpu.CompilerParams(dimension_semantics=("arbitrary",)),
    )(*operands)

    out = out2d.reshape(B, T, E).transpose(1, 0, 2)          # (T, B, E)
    return out, None   # need_weights=False


# ---------------------------------- main -------------------------------------

if __name__ == "__main__":
    T, B, E, H = 8, 2, 32, 4   # seq=8, batch=2, embed=32, heads=4 (head_dim=8)

    root = jax.random.PRNGKey(0)
    kx, kp = jax.random.split(root)
    x = jax.random.normal(kx, (T, B, E), jnp.float32)        # self-attention: q=k=v
    params = init_params(kp, E)

    out, _ = multihead_attention(x, x, x, params, num_heads=H)
    out = jax.block_until_ready(out)
    assert out.shape == (T, B, E)
    assert bool(jnp.all(jnp.isfinite(out)))
    print("KERNEL_OK")
</pallas_src>

<mosaic_0001>
module attributes {stable_mosaic.version = 11 : i64} {
  func.func @_mha_self_kernel(%arg0: i32, %arg1: memref<16x32xf32, #tpu.memory_space<vmem>>, %arg2: memref<32x96xbf16, #tpu.memory_space<vmem>>, %arg3: memref<1x96xf32, #tpu.memory_space<vmem>>, %arg4: memref<32x32xbf16, #tpu.memory_space<vmem>>, %arg5: memref<1x32xf32, #tpu.memory_space<vmem>>, %arg6: memref<16x32xf32, #tpu.memory_space<vmem>>, %arg7: memref<16x32xf32, #tpu.memory_space<vmem>>) attributes {dimension_semantics = [#tpu.dimension_semantics<arbitrary>], iteration_bounds = array<i64: 1>, scalar_prefetch = 0 : i64, scratch_operands = 1 : i64, tpu.core_type = #tpu.core_type<tc>, window_params = [{pipeline_mode = #tpu.pipeline_mode<synchronous>, transform_indices = @transform_0, window_bounds = array<i64: 16, 32>}, {pipeline_mode = #tpu.pipeline_mode<synchronous>, transform_indices = @transform_1, window_bounds = array<i64: 32, 96>}, {pipeline_mode = #tpu.pipeline_mode<synchronous>, transform_indices = @transform_2, window_bounds = array<i64: 1, 96>}, {pipeline_mode = #tpu.pipeline_mode<synchronous>, transform_indices = @transform_3, window_bounds = array<i64: 32, 32>}, {pipeline_mode = #tpu.pipeline_mode<synchronous>, transform_indices = @transform_4, window_bounds = array<i64: 1, 32>}, {pipeline_mode = #tpu.pipeline_mode<synchronous>, transform_indices = @transform_5, window_bounds = array<i64: 16, 32>}]} {
    %c0 = arith.constant 0 : index
    %c0_0 = arith.constant 0 : index
    %0 = vector.load %arg1[%c0, %c0_0] : memref<16x32xf32, #tpu.memory_space<vmem>>, vector<16x32xf32>
    %1 = arith.truncf %0 : vector<16x32xf32> to vector<16x32xbf16>
    %c0_1 = arith.constant 0 : index
    %c0_2 = arith.constant 0 : index
    %2 = vector.load %arg2[%c0_1, %c0_2] : memref<32x96xbf16, #tpu.memory_space<vmem>>, vector<32x96xbf16>
    %cst = arith.constant dense<0.000000e+00> : vector<16x96xf32>
    %3 = tpu.matmul %1, %2, %cst {dimension_numbers = #tpu.dot_dimension_numbers<[1], [0], [0], [1], [0, 0, 1, 1], [], []>} : vector<16x32xbf16>, vector<32x96xbf16>, vector<16x96xf32> -> vector<16x96xf32>
    %c0_3 = arith.constant 0 : index
    %c0_4 = arith.constant 0 : index
    %4 = vector.load %arg3[%c0_3, %c0_4] : memref<1x96xf32, #tpu.memory_space<vmem>>, vector<1x96xf32>
    %5 = vector.broadcast %4 : vector<1x96xf32> to vector<16x96xf32>
    %6 = arith.addf %3, %5 : vector<16x96xf32>
    %7 = vector.extract_strided_slice %6 {offsets = [0, 0], sizes = [16, 32], strides = [1, 1]} : vector<16x96xf32> to vector<16x32xf32>
    %8 = vector.extract_strided_slice %6 {offsets = [0, 32], sizes = [16, 32], strides = [1, 1]} : vector<16x96xf32> to vector<16x32xf32>
    %9 = vector.extract_strided_slice %6 {offsets = [0, 64], sizes = [16, 32], strides = [1, 1]} : vector<16x96xf32> to vector<16x32xf32>
    %c0_5 = arith.constant 0 : index
    %c0_6 = arith.constant 0 : index
    %10 = vector.load %arg4[%c0_5, %c0_6] : memref<32x32xbf16, #tpu.memory_space<vmem>>, vector<32x32xbf16>
    %c0_7 = arith.constant 0 : index
    %c0_8 = arith.constant 0 : index
    %11 = vector.load %arg5[%c0_7, %c0_8] : memref<1x32xf32, #tpu.memory_space<vmem>>, vector<1x32xf32>
    %12 = vector.extract_strided_slice %7 {offsets = [0, 0], sizes = [8, 32], strides = [1, 1]} : vector<16x32xf32> to vector<8x32xf32>
    %13 = vector.extract_strided_slice %8 {offsets = [0, 0], sizes = [8, 32], strides = [1, 1]} : vector<16x32xf32> to vector<8x32xf32>
    %14 = vector.extract_strided_slice %9 {offsets = [0, 0], sizes = [8, 32], strides = [1, 1]} : vector<16x32xf32> to vector<8x32xf32>
    %15 = vector.extract_strided_slice %12 {offsets = [0, 0], sizes = [8, 8], strides = [1, 1]} : vector<8x32xf32> to vector<8x8xf32>
    %16 = arith.truncf %15 : vector<8x8xf32> to vector<8x8xbf16>
    %17 = vector.extract_strided_slice %13 {offsets = [0, 0], sizes = [8, 8], strides = [1, 1]} : vector<8x32xf32> to vector<8x8xf32>
    %18 = arith.truncf %17 : vector<8x8xf32> to vector<8x8xbf16>
    %19 = vector.extract_strided_slice %14 {offsets = [0, 0], sizes = [8, 8], strides = [1, 1]} : vector<8x32xf32> to vector<8x8xf32>
    %20 = arith.truncf %19 : vector<8x8xf32> to vector<8x8xbf16>
    %cst_9 = arith.constant dense<0.000000e+00> : vector<8x8xf32>
    %21 = tpu.matmul %16, %18, %cst_9 {dimension_numbers = #tpu.dot_dimension_numbers<[1], [1], [0], [0], [0, 0, 1, 0], [], []>} : vector<8x8xbf16>, vector<8x8xbf16>, vector<8x8xf32> -> vector<8x8xf32>
    %cst_10 = arith.constant dense<0xFF800000> : vector<8xf32>
    %22 = vector.multi_reduction <maximumf>, %21, %cst_10 [1] : vector<8x8xf32> to vector<8xf32>
    %23 = vector.shape_cast %22 : vector<8xf32> to vector<8x1xf32>
    %24 = vector.broadcast %23 : vector<8x1xf32> to vector<8x8xf32>
    %25 = arith.subf %21, %24 : vector<8x8xf32>
    %26 = math.exp %25 : vector<8x8xf32>
    %cst_11 = arith.constant dense<0.000000e+00> : vector<8xf32>
    %27 = vector.multi_reduction <add>, %26, %cst_11 [1] : vector<8x8xf32> to vector<8xf32>
    %28 = vector.shape_cast %27 : vector<8xf32> to vector<8x1xf32>
    %29 = tpu.reciprocal %28 {approx = true} : vector<8x1xf32> -> vector<8x1xf32>
    %30 = vector.broadcast %29 : vector<8x1xf32> to vector<8x8xf32>
    %31 = arith.mulf %26, %30 : vector<8x8xf32>
    %32 = arith.truncf %31 : vector<8x8xf32> to vector<8x8xbf16>
    %cst_12 = arith.constant dense<0.000000e+00> : vector<8x8xf32>
    %33 = tpu.matmul %32, %20, %cst_12 {dimension_numbers = #tpu.dot_dimension_numbers<[1], [0], [0], [1], [0, 0, 1, 1], [], []>} : vector<8x8xbf16>, vector<8x8xbf16>, vector<8x8xf32> -> vector<8x8xf32>
    %c0_13 = arith.constant 0 : index
    %c0_14 = arith.constant 0 : index
    %34 = vector.load %arg7[%c0_13, %c0_14] : memref<16x32xf32, #tpu.memory_space<vmem>>, vector<8x8xf32>
    tpu.vector_store %arg7[%c0_13, %c0_14], %33 {strides = array<i32>} : memref<16x32xf32, #tpu.memory_space<vmem>>, vector<8x8xf32>,
    %35 = vector.extract_strided_slice %12 {offsets = [0, 8], sizes = [8, 8], strides = [1, 1]} : vector<8x32xf32> to vector<8x8xf32>
    %36 = arith.truncf %35 : vector<8x8xf32> to vector<8x8xbf16>
    %37 = vector.extract_strided_slice %13 {offsets = [0, 8], sizes = [8, 8], strides = [1, 1]} : vector<8x32xf32> to vector<8x8xf32>
    %38 = arith.truncf %37 : vector<8x8xf32> to vector<8x8xbf16>
    %39 = vector.extract_strided_slice %14 {offsets = [0, 8], sizes = [8, 8], strides = [1, 1]} : vector<8x32xf32> to vector<8x8xf32>
    %40 = arith.truncf %39 : vector<8x8xf32> to vector<8x8xbf16>
    %cst_15 = arith.constant dense<0.000000e+00> : vector<8x8xf32>
    %41 = tpu.matmul %36, %38, %cst_15 {dimension_numbers = #tpu.dot_dimension_numbers<[1], [1], [0], [0], [0, 0, 1, 0], [], []>} : vector<8x8xbf16>, vector<8x8xbf16>, vector<8x8xf32> -> vector<8x8xf32>
    %cst_16 = arith.constant dense<0xFF800000> : vector<8xf32>
    %42 = vector.multi_reduction <maximumf>, %41, %cst_16 [1] : vector<8x8xf32> to vector<8xf32>
    %43 = vector.shape_cast %42 : vector<8xf32> to vector<8x1xf32>
    %44 = vector.broadcast %43 : vector<8x1xf32> to vector<8x8xf32>
    %45 = arith.subf %41, %44 : vector<8x8xf32>
    %46 = math.exp %45 : vector<8x8xf32>
    %cst_17 = arith.constant dense<0.000000e+00> : vector<8xf32>
    %47 = vector.multi_reduction <add>, %46, %cst_17 [1] : vector<8x8xf32> to vector<8xf32>
    %48 = vector.shape_cast %47 : vector<8xf32> to vector<8x1xf32>
    %49 = tpu.reciprocal %48 {approx = true} : vector<8x1xf32> -> vector<8x1xf32>
    %50 = vector.broadcast %49 : vector<8x1xf32> to vector<8x8xf32>
    %51 = arith.mulf %46, %50 : vector<8x8xf32>
    %52 = arith.truncf %51 : vector<8x8xf32> to vector<8x8xbf16>
    %cst_18 = arith.constant dense<0.000000e+00> : vector<8x8xf32>
    %53 = tpu.matmul %52, %40, %cst_18 {dimension_numbers = #tpu.dot_dimension_numbers<[1], [0], [0], [1], [0, 0, 1, 1], [], []>} : vector<8x8xbf16>, vector<8x8xbf16>, vector<8x8xf32> -> vector<8x8xf32>
    %c0_19 = arith.constant 0 : index
    %c8 = arith.constant 8 : index
    %54 = vector.load %arg7[%c0_19, %c8] : memref<16x32xf32, #tpu.memory_space<vmem>>, vector<8x8xf32>
    tpu.vector_store %arg7[%c0_19, %c8], %53 {strides = array<i32>} : memref<16x32xf32, #tpu.memory_space<vmem>>, vector<8x8xf32>,
    %55 = vector.extract_strided_slice %12 {offsets = [0, 16], sizes = [8, 8], strides = [1, 1]} : vector<8x32xf32> to vector<8x8xf32>
    %56 = arith.truncf %55 : vector<8x8xf32> to vector<8x8xbf16>
    %57 = vector.extract_strided_slice %13 {offsets = [0, 16], sizes = [8, 8], strides = [1, 1]} : vector<8x32xf32> to vector<8x8xf32>
    %58 = arith.truncf %57 : vector<8x8xf32> to vector<8x8xbf16>
    %59 = vector.extract_strided_slice %14 {offsets = [0, 16], sizes = [8, 8], strides = [1, 1]} : vector<8x32xf32> to vector<8x8xf32>
    %60 = arith.truncf %59 : vector<8x8xf32> to vector<8x8xbf16>
    %cst_20 = arith.constant dense<0.000000e+00> : vector<8x8xf32>
    %61 = tpu.matmul %56, %58, %cst_20 {dimension_numbers = #tpu.dot_dimension_numbers<[1], [1], [0], [0], [0, 0, 1, 0], [], []>} : vector<8x8xbf16>, vector<8x8xbf16>, vector<8x8xf32> -> vector<8x8xf32>
    %cst_21 = arith.constant dense<0xFF800000> : vector<8xf32>
    %62 = vector.multi_reduction <maximumf>, %61, %cst_21 [1] : vector<8x8xf32> to vector<8xf32>
    %63 = vector.shape_cast %62 : vector<8xf32> to vector<8x1xf32>
    %64 = vector.broadcast %63 : vector<8x1xf32> to vector<8x8xf32>
    %65 = arith.subf %61, %64 : vector<8x8xf32>
    %66 = math.exp %65 : vector<8x8xf32>
    %cst_22 = arith.constant dense<0.000000e+00> : vector<8xf32>
    %67 = vector.multi_reduction <add>, %66, %cst_22 [1] : vector<8x8xf32> to vector<8xf32>
    %68 = vector.shape_cast %67 : vector<8xf32> to vector<8x1xf32>
    %69 = tpu.reciprocal %68 {approx = true} : vector<8x1xf32> -> vector<8x1xf32>
    %70 = vector.broadcast %69 : vector<8x1xf32> to vector<8x8xf32>
    %71 = arith.mulf %66, %70 : vector<8x8xf32>
    %72 = arith.truncf %71 : vector<8x8xf32> to vector<8x8xbf16>
    %cst_23 = arith.constant dense<0.000000e+00> : vector<8x8xf32>
    %73 = tpu.matmul %72, %60, %cst_23 {dimension_numbers = #tpu.dot_dimension_numbers<[1], [0], [0], [1], [0, 0, 1, 1], [], []>} : vector<8x8xbf16>, vector<8x8xbf16>, vector<8x8xf32> -> vector<8x8xf32>
    %c0_24 = arith.constant 0 : index
    %c16 = arith.constant 16 : index
    %74 = vector.load %arg7[%c0_24, %c16] : memref<16x32xf32, #tpu.memory_space<vmem>>, vector<8x8xf32>
    tpu.vector_store %arg7[%c0_24, %c16], %73 {strides = array<i32>} : memref<16x32xf32, #tpu.memory_space<vmem>>, vector<8x8xf32>,
    %75 = vector.extract_strided_slice %12 {offsets = [0, 24], sizes = [8, 8], strides = [1, 1]} : vector<8x32xf32> to vector<8x8xf32>
    %76 = arith.truncf %75 : vector<8x8xf32> to vector<8x8xbf16>
    %77 = vector.extract_strided_slice %13 {offsets = [0, 24], sizes = [8, 8], strides = [1, 1]} : vector<8x32xf32> to vector<8x8xf32>
    %78 = arith.truncf %77 : vector<8x8xf32> to vector<8x8xbf16>
    %79 = vector.extract_strided_slice %14 {offsets = [0, 24], sizes = [8, 8], strides = [1, 1]} : vector<8x32xf32> to vector<8x8xf32>
    %80 = arith.truncf %79 : vector<8x8xf32> to vector<8x8xbf16>
    %cst_25 = arith.constant dense<0.000000e+00> : vector<8x8xf32>
    %81 = tpu.matmul %76, %78, %cst_25 {dimension_numbers = #tpu.dot_dimension_numbers<[1], [1], [0], [0], [0, 0, 1, 0], [], []>} : vector<8x8xbf16>, vector<8x8xbf16>, vector<8x8xf32> -> vector<8x8xf32>
    %cst_26 = arith.constant dense<0xFF800000> : vector<8xf32>
    %82 = vector.multi_reduction <maximumf>, %81, %cst_26 [1] : vector<8x8xf32> to vector<8xf32>
    %83 = vector.shape_cast %82 : vector<8xf32> to vector<8x1xf32>
    %84 = vector.broadcast %83 : vector<8x1xf32> to vector<8x8xf32>
    %85 = arith.subf %81, %84 : vector<8x8xf32>
    %86 = math.exp %85 : vector<8x8xf32>
    %cst_27 = arith.constant dense<0.000000e+00> : vector<8xf32>
    %87 = vector.multi_reduction <add>, %86, %cst_27 [1] : vector<8x8xf32> to vector<8xf32>
    %88 = vector.shape_cast %87 : vector<8xf32> to vector<8x1xf32>
    %89 = tpu.reciprocal %88 {approx = true} : vector<8x1xf32> -> vector<8x1xf32>
    %90 = vector.broadcast %89 : vector<8x1xf32> to vector<8x8xf32>
    %91 = arith.mulf %86, %90 : vector<8x8xf32>
    %92 = arith.truncf %91 : vector<8x8xf32> to vector<8x8xbf16>
    %cst_28 = arith.constant dense<0.000000e+00> : vector<8x8xf32>
    %93 = tpu.matmul %92, %80, %cst_28 {dimension_numbers = #tpu.dot_dimension_numbers<[1], [0], [0], [1], [0, 0, 1, 1], [], []>} : vector<8x8xbf16>, vector<8x8xbf16>, vector<8x8xf32> -> vector<8x8xf32>
    %c0_29 = arith.constant 0 : index
    %c24 = arith.constant 24 : index
    %94 = vector.load %arg7[%c0_29, %c24] : memref<16x32xf32, #tpu.memory_space<vmem>>, vector<8x8xf32>
    tpu.vector_store %arg7[%c0_29, %c24], %93 {strides = array<i32>} : memref<16x32xf32, #tpu.memory_space<vmem>>, vector<8x8xf32>,
    %95 = vector.extract_strided_slice %7 {offsets = [8, 0], sizes = [8, 32], strides = [1, 1]} : vector<16x32xf32> to vector<8x32xf32>
    %96 = vector.extract_strided_slice %8 {offsets = [8, 0], sizes = [8, 32], strides = [1, 1]} : vector<16x32xf32> to vector<8x32xf32>
    %97 = vector.extract_strided_slice %9 {offsets = [8, 0], sizes = [8, 32], strides = [1, 1]} : vector<16x32xf32> to vector<8x32xf32>
    %98 = vector.extract_strided_slice %95 {offsets = [0, 0], sizes = [8, 8], strides = [1, 1]} : vector<8x32xf32> to vector<8x8xf32>
    %99 = arith.truncf %98 : vector<8x8xf32> to vector<8x8xbf16>
    %100 = vector.extract_strided_slice %96 {offsets = [0, 0], sizes = [8, 8], strides = [1, 1]} : vector<8x32xf32> to vector<8x8xf32>
    %101 = arith.truncf %100 : vector<8x8xf32> to vector<8x8xbf16>
    %102 = vector.extract_strided_slice %97 {offsets = [0, 0], sizes = [8, 8], strides = [1, 1]} : vector<8x32xf32> to vector<8x8xf32>
    %103 = arith.truncf %102 : vector<8x8xf32> to vector<8x8xbf16>
    %cst_30 = arith.constant dense<0.000000e+00> : vector<8x8xf32>
    %104 = tpu.matmul %99, %101, %cst_30 {dimension_numbers = #tpu.dot_dimension_numbers<[1], [1], [0], [0], [0, 0, 1, 0], [], []>} : vector<8x8xbf16>, vector<8x8xbf16>, vector<8x8xf32> -> vector<8x8xf32>
    %cst_31 = arith.constant dense<0xFF800000> : vector<8xf32>
    %105 = vector.multi_reduction <maximumf>, %104, %cst_31 [1] : vector<8x8xf32> to vector<8xf32>
    %106 = vector.shape_cast %105 : vector<8xf32> to vector<8x1xf32>
    %107 = vector.broadcast %106 : vector<8x1xf32> to vector<8x8xf32>
    %108 = arith.subf %104, %107 : vector<8x8xf32>
    %109 = math.exp %108 : vector<8x8xf32>
    %cst_32 = arith.constant dense<0.000000e+00> : vector<8xf32>
    %110 = vector.multi_reduction <add>, %109, %cst_32 [1] : vector<8x8xf32> to vector<8xf32>
    %111 = vector.shape_cast %110 : vector<8xf32> to vector<8x1xf32>
    %112 = tpu.reciprocal %111 {approx = true} : vector<8x1xf32> -> vector<8x1xf32>
    %113 = vector.broadcast %112 : vector<8x1xf32> to vector<8x8xf32>
    %114 = arith.mulf %109, %113 : vector<8x8xf32>
    %115 = arith.truncf %114 : vector<8x8xf32> to vector<8x8xbf16>
    %cst_33 = arith.constant dense<0.000000e+00> : vector<8x8xf32>
    %116 = tpu.matmul %115, %103, %cst_33 {dimension_numbers = #tpu.dot_dimension_numbers<[1], [0], [0], [1], [0, 0, 1, 1], [], []>} : vector<8x8xbf16>, vector<8x8xbf16>, vector<8x8xf32> -> vector<8x8xf32>
    %c8_34 = arith.constant 8 : index
    %c0_35 = arith.constant 0 : index
    %117 = vector.load %arg7[%c8_34, %c0_35] : memref<16x32xf32, #tpu.memory_space<vmem>>, vector<8x8xf32>
    tpu.vector_store %arg7[%c8_34, %c0_35], %116 {strides = array<i32>} : memref<16x32xf32, #tpu.memory_space<vmem>>, vector<8x8xf32>,
    %118 = vector.extract_strided_slice %95 {offsets = [0, 8], sizes = [8, 8], strides = [1, 1]} : vector<8x32xf32> to vector<8x8xf32>
    %119 = arith.truncf %118 : vector<8x8xf32> to vector<8x8xbf16>
    %120 = vector.extract_strided_slice %96 {offsets = [0, 8], sizes = [8, 8], strides = [1, 1]} : vector<8x32xf32> to vector<8x8xf32>
    %121 = arith.truncf %120 : vector<8x8xf32> to vector<8x8xbf16>
    %122 = vector.extract_strided_slice %97 {offsets = [0, 8], sizes = [8, 8], strides = [1, 1]} : vector<8x32xf32> to vector<8x8xf32>
    %123 = arith.truncf %122 : vector<8x8xf32> to vector<8x8xbf16>
    %cst_36 = arith.constant dense<0.000000e+00> : vector<8x8xf32>
    %124 = tpu.matmul %119, %121, %cst_36 {dimension_numbers = #tpu.dot_dimension_numbers<[1], [1], [0], [0], [0, 0, 1, 0], [], []>} : vector<8x8xbf16>, vector<8x8xbf16>, vector<8x8xf32> -> vector<8x8xf32>
    %cst_37 = arith.constant dense<0xFF800000> : vector<8xf32>
    %125 = vector.multi_reduction <maximumf>, %124, %cst_37 [1] : vector<8x8xf32> to vector<8xf32>
    %126 = vector.shape_cast %125 : vector<8xf32> to vector<8x1xf32>
    %127 = vector.broadcast %126 : vector<8x1xf32> to vector<8x8xf32>
    %128 = arith.subf %124, %127 : vector<8x8xf32>
    %129 = math.exp %128 : vector<8x8xf32>
    %cst_38 = arith.constant dense<0.000000e+00> : vector<8xf32>
    %130 = vector.multi_reduction <add>, %129, %cst_38 [1] : vector<8x8xf32> to vector<8xf32>
    %131 = vector.shape_cast %130 : vector<8xf32> to vector<8x1xf32>
    %132 = tpu.reciprocal %131 {approx = true} : vector<8x1xf32> -> vector<8x1xf32>
    %133 = vector.broadcast %132 : vector<8x1xf32> to vector<8x8xf32>
    %134 = arith.mulf %129, %133 : vector<8x8xf32>
    %135 = arith.truncf %134 : vector<8x8xf32> to vector<8x8xbf16>
    %cst_39 = arith.constant dense<0.000000e+00> : vector<8x8xf32>
    %136 = tpu.matmul %135, %123, %cst_39 {dimension_numbers = #tpu.dot_dimension_numbers<[1], [0], [0], [1], [0, 0, 1, 1], [], []>} : vector<8x8xbf16>, vector<8x8xbf16>, vector<8x8xf32> -> vector<8x8xf32>
    %c8_40 = arith.constant 8 : index
    %c8_41 = arith.constant 8 : index
    %137 = vector.load %arg7[%c8_40, %c8_41] : memref<16x32xf32, #tpu.memory_space<vmem>>, vector<8x8xf32>
    tpu.vector_store %arg7[%c8_40, %c8_41], %136 {strides = array<i32>} : memref<16x32xf32, #tpu.memory_space<vmem>>, vector<8x8xf32>,
    %138 = vector.extract_strided_slice %95 {offsets = [0, 16], sizes = [8, 8], strides = [1, 1]} : vector<8x32xf32> to vector<8x8xf32>
    %139 = arith.truncf %138 : vector<8x8xf32> to vector<8x8xbf16>
    %140 = vector.extract_strided_slice %96 {offsets = [0, 16], sizes = [8, 8], strides = [1, 1]} : vector<8x32xf32> to vector<8x8xf32>
    %141 = arith.truncf %140 : vector<8x8xf32> to vector<8x8xbf16>
    %142 = vector.extract_strided_slice %97 {offsets = [0, 16], sizes = [8, 8], strides = [1, 1]} : vector<8x32xf32> to vector<8x8xf32>
    %143 = arith.truncf %142 : vector<8x8xf32> to vector<8x8xbf16>
    %cst_42 = arith.constant dense<0.000000e+00> : vector<8x8xf32>
    %144 = tpu.matmul %139, %141, %cst_42 {dimension_numbers = #tpu.dot_dimension_numbers<[1], [1], [0], [0], [0, 0, 1, 0], [], []>} : vector<8x8xbf16>, vector<8x8xbf16>, vector<8x8xf32> -> vector<8x8xf32>
    %cst_43 = arith.constant dense<0xFF800000> : vector<8xf32>
    %145 = vector.multi_reduction <maximumf>, %144, %cst_43 [1] : vector<8x8xf32> to vector<8xf32>
    %146 = vector.shape_cast %145 : vector<8xf32> to vector<8x1xf32>
    %147 = vector.broadcast %146 : vector<8x1xf32> to vector<8x8xf32>
    %148 = arith.subf %144, %147 : vector<8x8xf32>
    %149 = math.exp %148 : vector<8x8xf32>
    %cst_44 = arith.constant dense<0.000000e+00> : vector<8xf32>
    %150 = vector.multi_reduction <add>, %149, %cst_44 [1] : vector<8x8xf32> to vector<8xf32>
    %151 = vector.shape_cast %150 : vector<8xf32> to vector<8x1xf32>
    %152 = tpu.reciprocal %151 {approx = true} : vector<8x1xf32> -> vector<8x1xf32>
    %153 = vector.broadcast %152 : vector<8x1xf32> to vector<8x8xf32>
    %154 = arith.mulf %149, %153 : vector<8x8xf32>
    %155 = arith.truncf %154 : vector<8x8xf32> to vector<8x8xbf16>
    %cst_45 = arith.constant dense<0.000000e+00> : vector<8x8xf32>
    %156 = tpu.matmul %155, %143, %cst_45 {dimension_numbers = #tpu.dot_dimension_numbers<[1], [0], [0], [1], [0, 0, 1, 1], [], []>} : vector<8x8xbf16>, vector<8x8xbf16>, vector<8x8xf32> -> vector<8x8xf32>
    %c8_46 = arith.constant 8 : index
    %c16_47 = arith.constant 16 : index
    %157 = vector.load %arg7[%c8_46, %c16_47] : memref<16x32xf32, #tpu.memory_space<vmem>>, vector<8x8xf32>
    tpu.vector_store %arg7[%c8_46, %c16_47], %156 {strides = array<i32>} : memref<16x32xf32, #tpu.memory_space<vmem>>, vector<8x8xf32>,
    %158 = vector.extract_strided_slice %95 {offsets = [0, 24], sizes = [8, 8], strides = [1, 1]} : vector<8x32xf32> to vector<8x8xf32>
    %159 = arith.truncf %158 : vector<8x8xf32> to vector<8x8xbf16>
    %160 = vector.extract_strided_slice %96 {offsets = [0, 24], sizes = [8, 8], strides = [1, 1]} : vector<8x32xf32> to vector<8x8xf32>
    %161 = arith.truncf %160 : vector<8x8xf32> to vector<8x8xbf16>
    %162 = vector.extract_strided_slice %97 {offsets = [0, 24], sizes = [8, 8], strides = [1, 1]} : vector<8x32xf32> to vector<8x8xf32>
    %163 = arith.truncf %162 : vector<8x8xf32> to vector<8x8xbf16>
    %cst_48 = arith.constant dense<0.000000e+00> : vector<8x8xf32>
    %164 = tpu.matmul %159, %161, %cst_48 {dimension_numbers = #tpu.dot_dimension_numbers<[1], [1], [0], [0], [0, 0, 1, 0], [], []>} : vector<8x8xbf16>, vector<8x8xbf16>, vector<8x8xf32> -> vector<8x8xf32>
    %cst_49 = arith.constant dense<0xFF800000> : vector<8xf32>
    %165 = vector.multi_reduction <maximumf>, %164, %cst_49 [1] : vector<8x8xf32> to vector<8xf32>
    %166 = vector.shape_cast %165 : vector<8xf32> to vector<8x1xf32>
    %167 = vector.broadcast %166 : vector<8x1xf32> to vector<8x8xf32>
    %168 = arith.subf %164, %167 : vector<8x8xf32>
    %169 = math.exp %168 : vector<8x8xf32>
    %cst_50 = arith.constant dense<0.000000e+00> : vector<8xf32>
    %170 = vector.multi_reduction <add>, %169, %cst_50 [1] : vector<8x8xf32> to vector<8xf32>
    %171 = vector.shape_cast %170 : vector<8xf32> to vector<8x1xf32>
    %172 = tpu.reciprocal %171 {approx = true} : vector<8x1xf32> -> vector<8x1xf32>
    %173 = vector.broadcast %172 : vector<8x1xf32> to vector<8x8xf32>
    %174 = arith.mulf %169, %173 : vector<8x8xf32>
    %175 = arith.truncf %174 : vector<8x8xf32> to vector<8x8xbf16>
    %cst_51 = arith.constant dense<0.000000e+00> : vector<8x8xf32>
    %176 = tpu.matmul %175, %163, %cst_51 {dimension_numbers = #tpu.dot_dimension_numbers<[1], [0], [0], [1], [0, 0, 1, 1], [], []>} : vector<8x8xbf16>, vector<8x8xbf16>, vector<8x8xf32> -> vector<8x8xf32>
    %c8_52 = arith.constant 8 : index
    %c24_53 = arith.constant 24 : index
    %177 = vector.load %arg7[%c8_52, %c24_53] : memref<16x32xf32, #tpu.memory_space<vmem>>, vector<8x8xf32>
    tpu.vector_store %arg7[%c8_52, %c24_53], %176 {strides = array<i32>} : memref<16x32xf32, #tpu.memory_space<vmem>>, vector<8x8xf32>,
    %c0_54 = arith.constant 0 : index
    %c0_55 = arith.constant 0 : index
    %178 = vector.load %arg7[%c0_54, %c0_55] : memref<16x32xf32, #tpu.memory_space<vmem>>, vector<16x32xf32>
    %179 = arith.truncf %178 : vector<16x32xf32> to vector<16x32xbf16>
    %cst_56 = arith.constant dense<0.000000e+00> : vector<16x32xf32>
    %180 = tpu.matmul %179, %10, %cst_56 {dimension_numbers = #tpu.dot_dimension_numbers<[1], [0], [0], [1], [0, 0, 1, 1], [], []>} : vector<16x32xbf16>, vector<32x32xbf16>, vector<16x32xf32> -> vector<16x32xf32>
    %181 = vector.broadcast %11 : vector<1x32xf32> to vector<16x32xf32>
    %182 = arith.addf %180, %181 : vector<16x32xf32>
    %c0_57 = arith.constant 0 : index
    %c0_58 = arith.constant 0 : index
    %183 = vector.load %arg6[%c0_57, %c0_58] : memref<16x32xf32, #tpu.memory_space<vmem>>, vector<16x32xf32>
    tpu.vector_store %arg6[%c0_57, %c0_58], %182 {strides = array<i32>} : memref<16x32xf32, #tpu.memory_space<vmem>>, vector<16x32xf32>,
    return
  }
  func.func @transform_0(%arg0: i32) -> (i32, i32) {
    %c0_i32 = arith.constant 0 : i32
    %c0_i32_0 = arith.constant 0 : i32
    %c0_i32_1 = arith.constant 0 : i32
    return %c0_i32, %c0_i32_0 : i32, i32
  }
  func.func @transform_1(%arg0: i32) -> (i32, i32) {
    %c0_i32 = arith.constant 0 : i32
    %c0_i32_0 = arith.constant 0 : i32
    %c0_i32_1 = arith.constant 0 : i32
    return %c0_i32, %c0_i32_0 : i32, i32
  }
  func.func @transform_2(%arg0: i32) -> (i32, i32) {
    %c0_i32 = arith.constant 0 : i32
    %c0_i32_0 = arith.constant 0 : i32
    %c0_i32_1 = arith.constant 0 : i32
    return %c0_i32, %c0_i32_0 : i32, i32
  }
  func.func @transform_3(%arg0: i32) -> (i32, i32) {
    %c0_i32 = arith.constant 0 : i32
    %c0_i32_0 = arith.constant 0 : i32
    %c0_i32_1 = arith.constant 0 : i32
    return %c0_i32, %c0_i32_0 : i32, i32
  }
  func.func @transform_4(%arg0: i32) -> (i32, i32) {
    %c0_i32 = arith.constant 0 : i32
    %c0_i32_0 = arith.constant 0 : i32
    %c0_i32_1 = arith.constant 0 : i32
    return %c0_i32, %c0_i32_0 : i32, i32
  }
  func.func @transform_5(%arg0: i32) -> (i32, i32) {
    %c0_i32 = arith.constant 0 : i32
    %c0_i32_0 = arith.constant 0 : i32
    %c0_i32_1 = arith.constant 0 : i32
    return %c0_i32, %c0_i32_0 : i32, i32
  }
}

</mosaic_0001>

<llo_original>
// kernel: tpu_custom_call.1
$region0: #{tpu_custom_call.1}
  #allocation0 [shape = 'u32[]', space=smem, size = 0x4, offset = 0x4, fixed_abs, tag = 'smem constant byte address 0x4 - core index']
  #allocation1 [shape = 'u32[144,128]{1,0:T(1,128)}', space=vmem, size = 0x12000, scoped, tag = 'internal scratch']
  #allocation2 [shape = 'f32[16,32]{1,0:T(8,128)}', space=vmem, size = 0x2000, scoped, tag = 'scratch operand']
  %s0 = inlined_call_operand.hbm [shape: f32[16,32], index: 0, kind: input, shape index: {}]
  %s1 = inlined_call_operand.hbm [shape: bf16[32,96], index: 1, kind: input, shape index: {}]
  %s2 = inlined_call_operand.vmem [shape: f32[1,96], index: 2, kind: input, shape index: {}]
  %s3 = inlined_call_operand.hbm [shape: bf16[32,32], index: 3, kind: input, shape index: {}]
  %s4 = inlined_call_operand.vmem [shape: f32[1,32], index: 4, kind: input, shape index: {}]
  %s5 = inlined_call_operand.hbm [shape: f32[16,32], index: 5, kind: output, shape index: {}]
  %s6 = sld [smem:[#allocation0]]
  $region42: #{tpu_custom_call.1} parent=0
    _
  %s8 = ssub.s32 1, %s6
  %s9 = scalar_select 0, %s8, %s6
  $region1: #{tpu_custom_call.1} parent=0
    #allocation3 [shape = 'u8[8192]{0}', space=vmem, size = 0x2000, scoped, tag = 'input window, operand 0, single buffered']
    #allocation4 [shape = 's32[1]{0}', space=sflag, size = 0x4, scoped, tag = 'scoped memory for tpu_custom_call.1']
    #allocation5 [shape = 's32[1]{0}', space=sflag, size = 0x4, scoped, tag = 'scoped memory for tpu_custom_call.1']
    #allocation6 [shape = 'u8[8192]{0}', space=vmem, size = 0x2000, scoped, tag = 'input window, operand 1, single buffered']
    #allocation7 [shape = 's32[1]{0}', space=sflag, size = 0x4, scoped, tag = 'scoped memory for tpu_custom_call.1']
    #allocation8 [shape = 'u8[8192]{0}', space=vmem, size = 0x2000, scoped, tag = 'input window, operand 3, single buffered']
    #allocation9 [shape = 'u8[8192]{0}', space=vmem, size = 0x2000, scoped, tag = 'output window, operand 0, single buffered']
    %10 = vsyncpa [#allocation4], 0
    %11 = vsyncpa [#allocation7], 0
    %12 = vsyncpa [#allocation5], 0
    // Predicated region
    $region2: #{tpu_custom_call.1} parent=1 // pred_check
      _
    $region3: #{tpu_custom_call.1} parent=1 // pred_check_branch
      %14 = sbr.rel (0) target = $region5
    $region4: #{tpu_custom_call.1} parent=1 // pred_region
      %s16 = ssub.s32 256, 256
      %17 = vsyncadd [#allocation4], %s16
      %s18 = sshll.u32 [#allocation3], 4
      %s19 = int_to_ptr.vmem [resolvable:$true] %s18
      %24 = dma.hbm_to_vmem [thread:$0]  %s0, 256, %s19, [#allocation4], 128, 128, 8
    $region5: #{tpu_custom_call.1} parent=1 // pred_fallthru
      _
    // Predicated region
    $region6: #{tpu_custom_call.1} parent=1 // pred_check
      _
    $region7: #{tpu_custom_call.1} parent=1 // pred_check_branch
      %26 = sbr.rel (0) target = $region9
    $region8: #{tpu_custom_call.1} parent=1 // pred_region
      %s28 = ssub.s32 256, 256
      %29 = vsyncadd [#allocation7], %s28
      %s30 = sshll.u32 [#allocation6], 4
      %s31 = int_to_ptr.vmem [resolvable:$true] %s30
      %36 = dma.hbm_to_vmem [thread:$0]  %s1, 256, %s31, [#allocation7], 64, 64, 4
    $region9: #{tpu_custom_call.1} parent=1 // pred_fallthru
      _
    // Predicated region
    $region10: #{tpu_custom_call.1} parent=1 // pred_check
      _
    $region11: #{tpu_custom_call.1} parent=1 // pred_check_branch
      %38 = sbr.rel (0) target = $region13
    $region12: #{tpu_custom_call.1} parent=1 // pred_region
      _
    $region13: #{tpu_custom_call.1} parent=1 // pred_fallthru
      _
    // Predicated region
    $region14: #{tpu_custom_call.1} parent=1 // pred_check
      _
    $region15: #{tpu_custom_call.1} parent=1 // pred_check_branch
      %40 = sbr.rel (0) target = $region17
    $region16: #{tpu_custom_call.1} parent=1 // pred_region
      %s42 = ssub.s32 256, 256
      %43 = vsyncadd [#allocation7], %s42
      %s44 = sshll.u32 [#allocation8], 4
      %s45 = int_to_ptr.vmem [resolvable:$true] %s44
      %50 = dma.hbm_to_vmem [thread:$0]  %s3, 256, %s45, [#allocation7], 64, 64, 4
    $region17: #{tpu_custom_call.1} parent=1 // pred_fallthru
      _
    // Predicated region
    $region18: #{tpu_custom_call.1} parent=1 // pred_check
      _
    $region19: #{tpu_custom_call.1} parent=1 // pred_check_branch
      %52 = sbr.rel (0) target = $region21
    $region20: #{tpu_custom_call.1} parent=1 // pred_region
      _
    $region21: #{tpu_custom_call.1} parent=1 // pred_fallthru
      _
    // Predicated region
    $region22: #{tpu_custom_call.1} parent=1 // pred_check
      _
    $region23: #{tpu_custom_call.1} parent=1 // pred_check_branch
      %54 = sbr.rel (0) target = $region25
    $region24: #{tpu_custom_call.1} parent=1 // pred_region
      %55 = dma.done [#allocation4], 256
    $region25: #{tpu_custom_call.1} parent=1 // pred_fallthru
      _
    // Predicated region
    $region26: #{tpu_custom_call.1} parent=1 // pred_check
      _
    $region27: #{tpu_custom_call.1} parent=1 // pred_check_branch
      %57 = sbr.rel (0) target = $region29
    $region28: #{tpu_custom_call.1} parent=1 // pred_region
      %58 = dma.done [#allocation7], 256
    $region29: #{tpu_custom_call.1} parent=1 // pred_fallthru
      _
    // Predicated region
    $region30: #{tpu_custom_call.1} parent=1 // pred_check
      _
    $region31: #{tpu_custom_call.1} parent=1 // pred_check_branch
      %60 = sbr.rel (0) target = $region33
    $region32: #{tpu_custom_call.1} parent=1 // pred_region
      %61 = dma.done [#allocation7], 256
    $region33: #{tpu_custom_call.1} parent=1 // pred_fallthru
      _
    %v63 = vld [vmem:[#allocation3] sm:$0xff]
    %v64 = vld [vmem:[#allocation3 + $0x8] sm:$0xff]
    %v65 = vpack.c.bf16 %v64, %v63
    %v66 = vld [vmem:[#allocation6] sm:$0xf]
    %v67 = vld [vmem:[#allocation6 + $0x4] sm:$0xf]
    %v68 = vld [vmem:[#allocation6 + $0x8] sm:$0xf]
    %v69 = vld [vmem:[#allocation6 + $0xc] sm:$0xf]
    %v70 = vld [vmem:[%s2] sm:$0x1]
    %v72 = vlaneseq
    %v73 = vshrl.u32 %v72, 7
    %v74 = vsub.s32 0, %v73
    %v75 = vrot.slane %v70, %v74
    %v81 = vunpack.c.l.b16 %v66
    %v82 = vunpack.c.l.b16 %v67
    %v83 = vunpack.c.l.b16 %v68
    %v84 = vunpack.c.l.b16 %v69
    %v85 = vpack.c.b16 %v82, %v81
    %v86 = vpack.c.b16 %v84, %v83
    %vm89 = vcmask 261120
    %v91 = vsel %vm89, %v65, 0
    %93 = vmatprep.subr.bf16.mxu0 0
    %94 = vmatpush1.bf16.msra.mxu0 %v85
    %95 = vmatprep.subr.bf16.mxu0 0
    %96 = vmatpush1.bf16.msra.mxu0 %v86
    %97 = vmatprep.subr.bf16.mxu0 0
    %98 = vmatpush1.bf16.msra.mxu0 0
    %99 = vmatprep.subr.bf16.mxu0 0
    %100 = vmatpush1.bf16.msra.mxu0 0
    %101 = vmatprep.subr.bf16.mxu0 0
    %102 = vmatpush1.bf16.msra.mxu0 0
    %103 = vmatprep.subr.bf16.mxu0 0
    %104 = vmatpush1.bf16.msra.mxu0 0
    %105 = vmatprep.subr.bf16.mxu0 0
    %106 = vmatpush1.bf16.msra.mxu0 0
    %107 = vmatprep.subr.bf16.mxu0 0
    %108 = vmatpush1.bf16.msra.mxu0 0
    %109 = vmatprep.subr.bf16.mxu0 0
    %110 = vmatpush1.bf16.msra.mxu0 0
    %111 = vmatprep.subr.bf16.mxu0 0
    %112 = vmatpush1.bf16.msra.mxu0 0
    %113 = vmatprep.subr.bf16.mxu0 0
    %114 = vmatpush1.bf16.msra.mxu0 0
    %115 = vmatprep.subr.bf16.mxu0 0
    %116 = vmatpush1.bf16.msra.mxu0 0
    %117 = vmatprep.subr.bf16.mxu0 0
    %118 = vmatpush1.bf16.msra.mxu0 0
    %119 = vmatprep.subr.bf16.mxu0 0
    %120 = vmatpush1.bf16.msra.mxu0 0
    %121 = vmatprep.subr.bf16.mxu0 0
    %122 = vmatpush1.bf16.msra.mxu0 0
    %123 = vmatprep.subr.bf16.mxu0 0
    %124 = vmatpush1.bf16.msra.mxu0 0
    %125 = vmatprep.mubr.bf16.mxu0 0
    %126 = vmatmul.mubr.bf16.gmra.mrb[0].mxu0 %v91
    %v127 = vpop.f32.mrb[0].mxu0
    %v128 = vadd.f32 %v75, %v127
    %v129 = vpop.f32.mrb[0].mxu0
    %v130 = vpop.f32.mrb[0].mxu0
    %v131 = vadd.f32 %v75, %v130
    %v132 = vpop.f32.mrb[0].mxu0
    %133 = vdwg.mxu0
    %v134 = vld [vmem:[#allocation8] sm:$0xf]
    %v135 = vld [vmem:[#allocation8 + $0x4] sm:$0xf]
    %v136 = vld [vmem:[#allocation8 + $0x8] sm:$0xf]
    %v137 = vld [vmem:[#allocation8 + $0xc] sm:$0xf]
    %v138 = vld [vmem:[%s4] sm:$0x1]
    %v139 = vpack.c.bf16 %v128, %v128
    %141 = vrot.lane.b32.xlu0 %v139, 96
    %v142 = vpop.permute.xlu0 %141
    %vm143 = vcmask 64512
    %v145 = vsel %vm143, %v139, 0
    %v148 = vsel %vm143, %v142, 0
    %150 = vmatprep.subr.bf16.mxu0 0
    %151 = vmatpush1.bf16.xpose.msra.mxu0 %v148
    %152 = vmatprep.subr.bf16.mxu0 0
    %153 = vmatpush1.bf16.xpose.msra.mxu0 0
    %154 = vmatprep.subr.bf16.mxu0 0
    %155 = vmatpush1.bf16.xpose.msra.mxu0 0
    %156 = vmatprep.subr.bf16.mxu0 0
    %157 = vmatpush1.bf16.xpose.msra.mxu0 0
    %158 = vmatprep.subr.bf16.mxu0 0
    %159 = vmatpush1.bf16.xpose.msra.mxu0 0
    %160 = vmatprep.subr.bf16.mxu0 0
    %161 = vmatpush1.bf16.xpose.msra.mxu0 0
    %162 = vmatprep.subr.bf16.mxu0 0
    %163 = vmatpush1.bf16.xpose.msra.mxu0 0
    %164 = vmatprep.subr.bf16.mxu0 0
    %165 = vmatpush1.bf16.xpose.msra.mxu0 0
    %166 = vmatprep.subr.bf16.mxu0 0
    %167 = vmatpush1.bf16.xpose.msra.mxu0 0
    %168 = vmatprep.subr.bf16.mxu0 0
    %169 = vmatpush1.bf16.xpose.msra.mxu0 0
    %170 = vmatprep.subr.bf16.mxu0 0
    %171 = vmatpush1.bf16.xpose.msra.mxu0 0
    %172 = vmatprep.subr.bf16.mxu0 0
    %173 = vmatpush1.bf16.xpose.msra.mxu0 0
    %174 = vmatprep.subr.bf16.mxu0 0
    %175 = vmatpush1.bf16.xpose.msra.mxu0 0
    %176 = vmatprep.subr.bf16.mxu0 0
    %177 = vmatpush1.bf16.xpose.msra.mxu0 0
    %178 = vmatprep.subr.bf16.mxu0 0
    %179 = vmatpush1.bf16.xpose.msra.mxu0 0
    %180 = vmatprep.subr.bf16.mxu0 0
    %181 = vmatpush1.bf16.xpose.msra.mxu0 0
    %182 = vmatprep.mubr.bf16.mxu0 0
    %183 = vmatmul.mubr.bf16.gmra.mrb[0].mxu0 %v145
    %v184 = vpop.f32.mrb[0].mxu0
    %v185 = vadd.f32 0.0, %v184
    %v186 = vpop.f32.mrb[0].mxu0
    %v187 = vpop.f32.mrb[0].mxu0
    %v188 = vpop.f32.mrb[0].mxu0
    %189 = vdwg.mxu0
    %v190 = vsel %vm143, %v185, -inf
    %191 = vmax.xlane.f32.xlu0 %v190
    %v192 = vpop.xlane.xlu0 %191
    %v193 = vsub.f32 %v185, %v192
    %v194 = vmul.f32 %v193, 1.442695
    %v195 = vpow.pop %v194
    %v196 = vsel %vm143, %v195, 0.0
    %197 = vadd.xlane.f32.xlu0 %v196
    %v198 = vpop.xlane.xlu0 %197
    %v199 = vrcp.pop %v198
    %v200 = vmul.f32 %v195, %v199
    %v201 = vpack.c.bf16 %v200, %v200
    %202 = vrot.lane.b32.xlu0 %v139, 64
    %v203 = vpop.permute.xlu0 %202
    %v205 = vsel %vm143, %v201, 0
    %vm207 = vcmask 1043456
    %v209 = vsel %vm207, %v203, 0
    %211 = vmatprep.subr.bf16.mxu0 0
    %212 = vmatpush1.bf16.msra.mxu0 %v209
    %213 = vmatprep.subr.bf16.mxu0 0
    %214 = vmatpush1.bf16.msra.mxu0 0
    %215 = vmatprep.subr.bf16.mxu0 0
    %216 = vmatpush1.bf16.msra.mxu0 0
    %217 = vmatprep.subr.bf16.mxu0 0
    %218 = vmatpush1.bf16.msra.mxu0 0
    %219 = vmatprep.subr.bf16.mxu0 0
    %220 = vmatpush1.bf16.msra.mxu0 0
    %221 = vmatprep.subr.bf16.mxu0 0
    %222 = vmatpush1.bf16.msra.mxu0 0
    %223 = vmatprep.subr.bf16.mxu0 0
    %224 = vmatpush1.bf16.msra.mxu0 0
    %225 = vmatprep.subr.bf16.mxu0 0
    %226 = vmatpush1.bf16.msra.mxu0 0
    %227 = vmatprep.subr.bf16.mxu0 0
    %228 = vmatpush1.bf16.msra.mxu0 0
    %229 = vmatprep.subr.bf16.mxu0 0
    %230 = vmatpush1.bf16.msra.mxu0 0
    %231 = vmatprep.subr.bf16.mxu0 0
    %232 = vmatpush1.bf16.msra.mxu0 0
    %233 = vmatprep.subr.bf16.mxu0 0
    %234 = vmatpush1.bf16.msra.mxu0 0
    %235 = vmatprep.subr.bf16.mxu0 0
    %236 = vmatpush1.bf16.msra.mxu0 0
    %237 = vmatprep.subr.bf16.mxu0 0
    %238 = vmatpush1.bf16.msra.mxu0 0
    %239 = vmatprep.subr.bf16.mxu0 0
    %240 = vmatpush1.bf16.msra.mxu0 0
    %241 = vmatprep.subr.bf16.mxu0 0
    %242 = vmatpush1.bf16.msra.mxu0 0
    %243 = vmatprep.mubr.bf16.mxu0 0
    %244 = vmatmul.mubr.bf16.gmra.mrb[0].mxu0 %v205
    %v245 = vpop.f32.mrb[0].mxu0
    %v246 = vadd.f32 0.0, %v245
    %v247 = vpop.f32.mrb[0].mxu0
    %v248 = vpop.f32.mrb[0].mxu0
    %v249 = vpop.f32.mrb[0].mxu0
    %250 = vdwg.mxu0
    %251 = vst.msk [vmem:[#allocation2] sm:$0xff] %vm143, %v246
    %252 = vrot.lane.b32.xlu0 %v139, 120
    %v253 = vpop.permute.xlu0 %252
    %254 = vrot.lane.b32.xlu0 %v139, 88
    %v255 = vpop.permute.xlu0 %254
    %v257 = vsel %vm143, %v253, 0
    %v260 = vsel %vm143, %v255, 0
    %262 = vmatprep.subr.bf16.mxu0 0
    %263 = vmatpush1.bf16.xpose.msra.mxu0 %v260
    %264 = vmatprep.subr.bf16.mxu0 0
    %265 = vmatpush1.bf16.xpose.msra.mxu0 0
    %266 = vmatprep.subr.bf16.mxu0 0
    %267 = vmatpush1.bf16.xpose.msra.mxu0 0
    %268 = vmatprep.subr.bf16.mxu0 0
    %269 = vmatpush1.bf16.xpose.msra.mxu0 0
    %270 = vmatprep.subr.bf16.mxu0 0
    %271 = vmatpush1.bf16.xpose.msra.mxu0 0
    %272 = vmatprep.subr.bf16.mxu0 0
    %273 = vmatpush1.bf16.xpose.msra.mxu0 0
    %274 = vmatprep.subr.bf16.mxu0 0
    %275 = vmatpush1.bf16.xpose.msra.mxu0 0
    %276 = vmatprep.subr.bf16.mxu0 0
    %277 = vmatpush1.bf16.xpose.msra.mxu0 0
    %278 = vmatprep.subr.bf16.mxu0 0
    %279 = vmatpush1.bf16.xpose.msra.mxu0 0
    %280 = vmatprep.subr.bf16.mxu0 0
    %281 = vmatpush1.bf16.xpose.msra.mxu0 0
    %282 = vmatprep.subr.bf16.mxu0 0
    %283 = vmatpush1.bf16.xpose.msra.mxu0 0
    %284 = vmatprep.subr.bf16.mxu0 0
    %285 = vmatpush1.bf16.xpose.msra.mxu0 0
    %286 = vmatprep.subr.bf16.mxu0 0
    %287 = vmatpush1.bf16.xpose.msra.mxu0 0
    %288 = vmatprep.subr.bf16.mxu0 0
    %289 = vmatpush1.bf16.xpose.msra.mxu0 0
    %290 = vmatprep.subr.bf16.mxu0 0
    %291 = vmatpush1.bf16.xpose.msra.mxu0 0
    %292 = vmatprep.subr.bf16.mxu0 0
    %293 = vmatpush1.bf16.xpose.msra.mxu0 0
    %294 = vmatprep.mubr.bf16.mxu0 0
    %295 = vmatmul.mubr.bf16.gmra.mrb[0].mxu0 %v257
    %v296 = vpop.f32.mrb[0].mxu0
    %v297 = vadd.f32 0.0, %v296
    %v298 = vpop.f32.mrb[0].mxu0
    %v299 = vpop.f32.mrb[0].mxu0
    %v300 = vpop.f32.mrb[0].mxu0
    %301 = vdwg.mxu0
    %v302 = vsel %vm143, %v297, -inf
    %303 = vmax.xlane.f32.xlu0 %v302
    %v304 = vpop.xlane.xlu0 %303
    %v305 = vsub.f32 %v297, %v304
    %v306 = vmul.f32 %v305, 1.442695
    %v307 = vpow.pop %v306
    %v308 = vsel %vm143, %v307, 0.0
    %309 = vadd.xlane.f32.xlu0 %v308
    %v310 = vpop.xlane.xlu0 %309
    %v311 = vrcp.pop %v310
    %v312 = vmul.f32 %v307, %v311
    %v313 = vpack.c.bf16 %v312, %v312
    %314 = vrot.lane.b32.xlu0 %v139, 56
    %v315 = vpop.permute.xlu0 %314
    %v317 = vsel %vm143, %v313, 0
    %v320 = vsel %vm207, %v315, 0
    %322 = vmatprep.subr.bf16.mxu0 0
    %323 = vmatpush1.bf16.msra.mxu0 %v320
    %324 = vmatprep.subr.bf16.mxu0 0
    %325 = vmatpush1.bf16.msra.mxu0 0
    %326 = vmatprep.subr.bf16.mxu0 0
    %327 = vmatpush1.bf16.msra.mxu0 0
    %328 = vmatprep.subr.bf16.mxu0 0
    %329 = vmatpush1.bf16.msra.mxu0 0
    %330 = vmatprep.subr.bf16.mxu0 0
    %331 = vmatpush1.bf16.msra.mxu0 0
    %332 = vmatprep.subr.bf16.mxu0 0
    %333 = vmatpush1.bf16.msra.mxu0 0
    %334 = vmatprep.subr.bf16.mxu0 0
    %335 = vmatpush1.bf16.msra.mxu0 0
    %336 = vmatprep.subr.bf16.mxu0 0
    %337 = vmatpush1.bf16.msra.mxu0 0
    %338 = vmatprep.subr.bf16.mxu0 0
    %339 = vmatpush1.bf16.msra.mxu0 0
    %340 = vmatprep.subr.bf16.mxu0 0
    %341 = vmatpush1.bf16.msra.mxu0 0
    %342 = vmatprep.subr.bf16.mxu0 0
    %343 = vmatpush1.bf16.msra.mxu0 0
    %344 = vmatprep.subr.bf16.mxu0 0
    %345 = vmatpush1.bf16.msra.mxu0 0
    %346 = vmatprep.subr.bf16.mxu0 0
    %347 = vmatpush1.bf16.msra.mxu0 0
    %348 = vmatprep.subr.bf16.mxu0 0
    %349 = vmatpush1.bf16.msra.mxu0 0
    %350 = vmatprep.subr.bf16.mxu0 0
    %351 = vmatpush1.bf16.msra.mxu0 0
    %352 = vmatprep.subr.bf16.mxu0 0
    %353 = vmatpush1.bf16.msra.mxu0 0
    %354 = vmatprep.mubr.bf16.mxu0 0
    %355 = vmatmul.mubr.bf16.gmra.mrb[0].mxu0 %v317
    %v356 = vpop.f32.mrb[0].mxu0
    %v357 = vadd.f32 0.0, %v356
    %v358 = vpop.f32.mrb[0].mxu0
    %v359 = vpop.f32.mrb[0].mxu0
    %v360 = vpop.f32.mrb[0].mxu0
    %361 = vdwg.mxu0
    %363 = vrot.lane.b32.xlu0 %v357, 8
    %v364 = vpop.permute.xlu0 %363
    %vm366 = vcmask 130112
    %367 = vst.msk [vmem:[#allocation2] sm:$0xff] %vm366, %v364
    %368 = vrot.lane.b32.xlu0 %v139, 112
    %v369 = vpop.permute.xlu0 %368
    %370 = vrot.lane.b32.xlu0 %v139, 80
    %v371 = vpop.permute.xlu0 %370
    %v373 = vsel %vm143, %v369, 0
    %v376 = vsel %vm143, %v371, 0
    %378 = vmatprep.subr.bf16.mxu0 0
    %379 = vmatpush1.bf16.xpose.msra.mxu0 %v376
    %380 = vmatprep.subr.bf16.mxu0 0
    %381 = vmatpush1.bf16.xpose.msra.mxu0 0
    %382 = vmatprep.subr.bf16.mxu0 0
    %383 = vmatpush1.bf16.xpose.msra.mxu0 0
    %384 = vmatprep.subr.bf16.mxu0 0
    %385 = vmatpush1.bf16.xpose.msra.mxu0 0
    %386 = vmatprep.subr.bf16.mxu0 0
    %387 = vmatpush1.bf16.xpose.msra.mxu0 0
    %388 = vmatprep.subr.bf16.mxu0 0
    %389 = vmatpush1.bf16.xpose.msra.mxu0 0
    %390 = vmatprep.subr.bf16.mxu0 0
    %391 = vmatpush1.bf16.xpose.msra.mxu0 0
    %392 = vmatprep.subr.bf16.mxu0 0
    %393 = vmatpush1.bf16.xpose.msra.mxu0 0
    %394 = vmatprep.subr.bf16.mxu0 0
    %395 = vmatpush1.bf16.xpose.msra.mxu0 0
    %396 = vmatprep.subr.bf16.mxu0 0
    %397 = vmatpush1.bf16.xpose.msra.mxu0 0
    %398 = vmatprep.subr.bf16.mxu0 0
    %399 = vmatpush1.bf16.xpose.msra.mxu0 0
    %400 = vmatprep.subr.bf16.mxu0 0
    %401 = vmatpush1.bf16.xpose.msra.mxu0 0
    %402 = vmatprep.subr.bf16.mxu0 0
    %403 = vmatpush1.bf16.xpose.msra.mxu0 0
    %404 = vmatprep.subr.bf16.mxu0 0
    %405 = vmatpush1.bf16.xpose.msra.mxu0 0
    %406 = vmatprep.subr.bf16.mxu0 0
    %407 = vmatpush1.bf16.xpose.msra.mxu0 0
    %408 = vmatprep.subr.bf16.mxu0 0
    %409 = vmatpush1.bf16.xpose.msra.mxu0 0
    %410 = vmatprep.mubr.bf16.mxu0 0
    %411 = vmatmul.mubr.bf16.gmra.mrb[0].mxu0 %v373
    %v412 = vpop.f32.mrb[0].mxu0
    %v413 = vadd.f32 0.0, %v412
    %v414 = vpop.f32.mrb[0].mxu0
    %v415 = vpop.f32.mrb[0].mxu0
    %v416 = vpop.f32.mrb[0].mxu0
    %417 = vdwg.mxu0
    %v418 = vsel %vm143, %v413, -inf
    %419 = vmax.xlane.f32.xlu0 %v418
    %v420 = vpop.xlane.xlu0 %419
    %v421 = vsub.f32 %v413, %v420
    %v422 = vmul.f32 %v421, 1.442695
    %v423 = vpow.pop %v422
    %v424 = vsel %vm143, %v423, 0.0
    %425 = vadd.xlane.f32.xlu0 %v424
    %v426 = vpop.xlane.xlu0 %425
    %v427 = vrcp.pop %v426
    %v428 = vmul.f32 %v423, %v427
    %v429 = vpack.c.bf16 %v428, %v428
    %430 = vrot.lane.b32.xlu0 %v139, 48
    %v431 = vpop.permute.xlu0 %430
    %v433 = vsel %vm143, %v429, 0
    %v436 = vsel %vm207, %v431, 0
    %438 = vmatprep.subr.bf16.mxu0 0
    %439 = vmatpush1.bf16.msra.mxu0 %v436
    %440 = vmatprep.subr.bf16.mxu0 0
    %441 = vmatpush1.bf16.msra.mxu0 0
    %442 = vmatprep.subr.bf16.mxu0 0
    %443 = vmatpush1.bf16.msra.mxu0 0
    %444 = vmatprep.subr.bf16.mxu0 0
    %445 = vmatpush1.bf16.msra.mxu0 0
    %446 = vmatprep.subr.bf16.mxu0 0
    %447 = vmatpush1.bf16.msra.mxu0 0
    %448 = vmatprep.subr.bf16.mxu0 0
    %449 = vmatpush1.bf16.msra.mxu0 0
    %450 = vmatprep.subr.bf16.mxu0 0
    %451 = vmatpush1.bf16.msra.mxu0 0
    %452 = vmatprep.subr.bf16.mxu0 0
    %453 = vmatpush1.bf16.msra.mxu0 0
    %454 = vmatprep.subr.bf16.mxu0 0
    %455 = vmatpush1.bf16.msra.mxu0 0
    %456 = vmatprep.subr.bf16.mxu0 0
    %457 = vmatpush1.bf16.msra.mxu0 0
    %458 = vmatprep.subr.bf16.mxu0 0
    %459 = vmatpush1.bf16.msra.mxu0 0
    %460 = vmatprep.subr.bf16.mxu0 0
    %461 = vmatpush1.bf16.msra.mxu0 0
    %462 = vmatprep.subr.bf16.mxu0 0
    %463 = vmatpush1.bf16.msra.mxu0 0
    %464 = vmatprep.subr.bf16.mxu0 0
    %465 = vmatpush1.bf16.msra.mxu0 0
    %466 = vmatprep.subr.bf16.mxu0 0
    %467 = vmatpush1.bf16.msra.mxu0 0
    %468 = vmatprep.subr.bf16.mxu0 0
    %469 = vmatpush1.bf16.msra.mxu0 0
    %470 = vmatprep.mubr.bf16.mxu0 0
    %471 = vmatmul.mubr.bf16.gmra.mrb[0].mxu0 %v433
    %v472 = vpop.f32.mrb[0].mxu0
    %v473 = vadd.f32 0.0, %v472
    %v474 = vpop.f32.mrb[0].mxu0
    %v475 = vpop.f32.mrb[0].mxu0
    %v476 = vpop.f32.mrb[0].mxu0
    %477 = vdwg.mxu0
    %479 = vrot.lane.b32.xlu0 %v473, 16
    %v480 = vpop.permute.xlu0 %479
    %vm482 = vcmask 195712
    %483 = vst.msk [vmem:[#allocation2] sm:$0xff] %vm482, %v480
    %484 = vrot.lane.b32.xlu0 %v139, 104
    %v485 = vpop.permute.xlu0 %484
    %486 = vrot.lane.b32.xlu0 %v139, 72
    %v487 = vpop.permute.xlu0 %486
    %v489 = vsel %vm143, %v485, 0
    %v492 = vsel %vm143, %v487, 0
    %494 = vmatprep.subr.bf16.mxu0 0
    %495 = vmatpush1.bf16.xpose.msra.mxu0 %v492
    %496 = vmatprep.subr.bf16.mxu0 0
    %497 = vmatpush1.bf16.xpose.msra.mxu0 0
    %498 = vmatprep.subr.bf16.mxu0 0
    %499 = vmatpush1.bf16.xpose.msra.mxu0 0
    %500 = vmatprep.subr.bf16.mxu0 0
    %501 = vmatpush1.bf16.xpose.msra.mxu0 0
    %502 = vmatprep.subr.bf16.mxu0 0
    %503 = vmatpush1.bf16.xpose.msra.mxu0 0
    %504 = vmatprep.subr.bf16.mxu0 0
    %505 = vmatpush1.bf16.xpose.msra.mxu0 0
    %506 = vmatprep.subr.bf16.mxu0 0
    %507 = vmatpush1.bf16.xpose.msra.mxu0 0
    %508 = vmatprep.subr.bf16.mxu0 0
    %509 = vmatpush1.bf16.xpose.msra.mxu0 0
    %510 = vmatprep.subr.bf16.mxu0 0
    %511 = vmatpush1.bf16.xpose.msra.mxu0 0
    %512 = vmatprep.subr.bf16.mxu0 0
    %513 = vmatpush1.bf16.xpose.msra.mxu0 0
    %514 = vmatprep.subr.bf16.mxu0 0
    %515 = vmatpush1.bf16.xpose.msra.mxu0 0
    %516 = vmatprep.subr.bf16.mxu0 0
    %517 = vmatpush1.bf16.xpose.msra.mxu0 0
    %518 = vmatprep.subr.bf16.mxu0 0
    %519 = vmatpush1.bf16.xpose.msra.mxu0 0
    %520 = vmatprep.subr.bf16.mxu0 0
    %521 = vmatpush1.bf16.xpose.msra.mxu0 0
    %522 = vmatprep.subr.bf16.mxu0 0
    %523 = vmatpush1.bf16.xpose.msra.mxu0 0
    %524 = vmatprep.subr.bf16.mxu0 0
    %525 = vmatpush1.bf16.xpose.msra.mxu0 0
    %526 = vmatprep.mubr.bf16.mxu0 0
    %527 = vmatmul.mubr.bf16.gmra.mrb[0].mxu0 %v489
    %v528 = vpop.f32.mrb[0].mxu0
    %v529 = vadd.f32 0.0, %v528
    %v530 = vpop.f32.mrb[0].mxu0
    %v531 = vpop.f32.mrb[0].mxu0
    %v532 = vpop.f32.mrb[0].mxu0
    %533 = vdwg.mxu0
    %v534 = vsel %vm143, %v529, -inf
    %535 = vmax.xlane.f32.xlu0 %v534
    %v536 = vpop.xlane.xlu0 %535
    %v537 = vsub.f32 %v529, %v536
    %v538 = vmul.f32 %v537, 1.442695
    %v539 = vpow.pop %v538
    %v540 = vsel %vm143, %v539, 0.0
    %541 = vadd.xlane.f32.xlu0 %v540
    %v542 = vpop.xlane.xlu0 %541
    %v543 = vrcp.pop %v542
    %v544 = vmul.f32 %v539, %v543
    %v545 = vpack.c.bf16 %v544, %v544
    %546 = vrot.lane.b32.xlu0 %v139, 40
    %v547 = vpop.permute.xlu0 %546
    %v549 = vsel %vm143, %v545, 0
    %v552 = vsel %vm207, %v547, 0
    %554 = vmatprep.subr.bf16.mxu0 0
    %555 = vmatpush1.bf16.msra.mxu0 %v552
    %556 = vmatprep.subr.bf16.mxu0 0
    %557 = vmatpush1.bf16.msra.mxu0 0
    %558 = vmatprep.subr.bf16.mxu0 0
    %559 = vmatpush1.bf16.msra.mxu0 0
    %560 = vmatprep.subr.bf16.mxu0 0
    %561 = vmatpush1.bf16.msra.mxu0 0
    %562 = vmatprep.subr.bf16.mxu0 0
    %563 = vmatpush1.bf16.msra.mxu0 0
    %564 = vmatprep.subr.bf16.mxu0 0
    %565 = vmatpush1.bf16.msra.mxu0 0
    %566 = vmatprep.subr.bf16.mxu0 0
    %567 = vmatpush1.bf16.msra.mxu0 0
    %568 = vmatprep.subr.bf16.mxu0 0
    %569 = vmatpush1.bf16.msra.mxu0 0
    %570 = vmatprep.subr.bf16.mxu0 0
    %571 = vmatpush1.bf16.msra.mxu0 0
    %572 = vmatprep.subr.bf16.mxu0 0
    %573 = vmatpush1.bf16.msra.mxu0 0
    %574 = vmatprep.subr.bf16.mxu0 0
    %575 = vmatpush1.bf16.msra.mxu0 0
    %576 = vmatprep.subr.bf16.mxu0 0
    %577 = vmatpush1.bf16.msra.mxu0 0
    %578 = vmatprep.subr.bf16.mxu0 0
    %579 = vmatpush1.bf16.msra.mxu0 0
    %580 = vmatprep.subr.bf16.mxu0 0
    %581 = vmatpush1.bf16.msra.mxu0 0
    %582 = vmatprep.subr.bf16.mxu0 0
    %583 = vmatpush1.bf16.msra.mxu0 0
    %584 = vmatprep.subr.bf16.mxu0 0
    %585 = vmatpush1.bf16.msra.mxu0 0
    %586 = vmatprep.mubr.bf16.mxu0 0
    %587 = vmatmul.mubr.bf16.gmra.mrb[0].mxu0 %v549
    %v588 = vpop.f32.mrb[0].mxu0
    %v589 = vadd.f32 0.0, %v588
    %v590 = vpop.f32.mrb[0].mxu0
    %v591 = vpop.f32.mrb[0].mxu0
    %v592 = vpop.f32.mrb[0].mxu0
    %593 = vdwg.mxu0
    %595 = vrot.lane.b32.xlu0 %v589, 24
    %v596 = vpop.permute.xlu0 %595
    %vm598 = vcmask 261312
    %599 = vst.msk [vmem:[#allocation2] sm:$0xff] %vm598, %v596
    %v600 = vpack.c.bf16 %v131, %v131
    %602 = vrot.lane.b32.xlu0 %v600, 96
    %v603 = vpop.permute.xlu0 %602
    %v605 = vsel %vm143, %v600, 0
    %v608 = vsel %vm143, %v603, 0
    %610 = vmatprep.subr.bf16.mxu0 0
    %611 = vmatpush1.bf16.xpose.msra.mxu0 %v608
    %612 = vmatprep.subr.bf16.mxu0 0
    %613 = vmatpush1.bf16.xpose.msra.mxu0 0
    %614 = vmatprep.subr.bf16.mxu0 0
    %615 = vmatpush1.bf16.xpose.msra.mxu0 0
    %616 = vmatprep.subr.bf16.mxu0 0
    %617 = vmatpush1.bf16.xpose.msra.mxu0 0
    %618 = vmatprep.subr.bf16.mxu0 0
    %619 = vmatpush1.bf16.xpose.msra.mxu0 0
    %620 = vmatprep.subr.bf16.mxu0 0
    %621 = vmatpush1.bf16.xpose.msra.mxu0 0
    %622 = vmatprep.subr.bf16.mxu0 0
    %623 = vmatpush1.bf16.xpose.msra.mxu0 0
    %624 = vmatprep.subr.bf16.mxu0 0
    %625 = vmatpush1.bf16.xpose.msra.mxu0 0
    %626 = vmatprep.subr.bf16.mxu0 0
    %627 = vmatpush1.bf16.xpose.msra.mxu0 0
    %628 = vmatprep.subr.bf16.mxu0 0
    %629 = vmatpush1.bf16.xpose.msra.mxu0 0
    %630 = vmatprep.subr.bf16.mxu0 0
    %631 = vmatpush1.bf16.xpose.msra.mxu0 0
    %632 = vmatprep.subr.bf16.mxu0 0
    %633 = vmatpush1.bf16.xpose.msra.mxu0 0
    %634 = vmatprep.subr.bf16.mxu0 0
    %635 = vmatpush1.bf16.xpose.msra.mxu0 0
    %636 = vmatprep.subr.bf16.mxu0 0
    %637 = vmatpush1.bf16.xpose.msra.mxu0 0
    %638 = vmatprep.subr.bf16.mxu0 0
    %639 = vmatpush1.bf16.xpose.msra.mxu0 0
    %640 = vmatprep.subr.bf16.mxu0 0
    %641 = vmatpush1.bf16.xpose.msra.mxu0 0
    %642 = vmatprep.mubr.bf16.mxu0 0
    %643 = vmatmul.mubr.bf16.gmra.mrb[0].mxu0 %v605
    %v644 = vpop.f32.mrb[0].mxu0
    %v645 = vadd.f32 0.0, %v644
    %v646 = vpop.f32.mrb[0].mxu0
    %v647 = vpop.f32.mrb[0].mxu0
    %v648 = vpop.f32.mrb[0].mxu0
    %649 = vdwg.mxu0
    %v650 = vsel %vm143, %v645, -inf
    %651 = vmax.xlane.f32.xlu0 %v650
    %v652 = vpop.xlane.xlu0 %651
    %v653 = vsub.f32 %v645, %v652
    %v654 = vmul.f32 %v653, 1.442695
    %v655 = vpow.pop %v654
    %v656 = vsel %vm143, %v655, 0.0
    %657 = vadd.xlane.f32.xlu0 %v656
    %v658 = vpop.xlane.xlu0 %657
    %v659 = vrcp.pop %v658
    %v660 = vmul.f32 %v655, %v659
    %v661 = vpack.c.bf16 %v660, %v660
    %662 = vrot.lane.b32.xlu0 %v600, 64
    %v663 = vpop.permute.xlu0 %662
    %v665 = vsel %vm143, %v661, 0
    %v668 = vsel %vm207, %v663, 0
    %670 = vmatprep.subr.bf16.mxu0 0
    %671 = vmatpush1.bf16.msra.mxu0 %v668
    %672 = vmatprep.subr.bf16.mxu0 0
    %673 = vmatpush1.bf16.msra.mxu0 0
    %674 = vmatprep.subr.bf16.mxu0 0
    %675 = vmatpush1.bf16.msra.mxu0 0
    %676 = vmatprep.subr.bf16.mxu0 0
    %677 = vmatpush1.bf16.msra.mxu0 0
    %678 = vmatprep.subr.bf16.mxu0 0
    %679 = vmatpush1.bf16.msra.mxu0 0
    %680 = vmatprep.subr.bf16.mxu0 0
    %681 = vmatpush1.bf16.msra.mxu0 0
    %682 = vmatprep.subr.bf16.mxu0 0
    %683 = vmatpush1.bf16.msra.mxu0 0
    %684 = vmatprep.subr.bf16.mxu0 0
    %685 = vmatpush1.bf16.msra.mxu0 0
    %686 = vmatprep.subr.bf16.mxu0 0
    %687 = vmatpush1.bf16.msra.mxu0 0
    %688 = vmatprep.subr.bf16.mxu0 0
    %689 = vmatpush1.bf16.msra.mxu0 0
    %690 = vmatprep.subr.bf16.mxu0 0
    %691 = vmatpush1.bf16.msra.mxu0 0
    %692 = vmatprep.subr.bf16.mxu0 0
    %693 = vmatpush1.bf16.msra.mxu0 0
    %694 = vmatprep.subr.bf16.mxu0 0
    %695 = vmatpush1.bf16.msra.mxu0 0
    %696 = vmatprep.subr.bf16.mxu0 0
    %697 = vmatpush1.bf16.msra.mxu0 0
    %698 = vmatprep.subr.bf16.mxu0 0
    %699 = vmatpush1.bf16.msra.mxu0 0
    %700 = vmatprep.subr.bf16.mxu0 0
    %701 = vmatpush1.bf16.msra.mxu0 0
    %702 = vmatprep.mubr.bf16.mxu0 0
    %703 = vmatmul.mubr.bf16.gmra.mrb[0].mxu0 %v665
    %v704 = vpop.f32.mrb[0].mxu0
    %v705 = vadd.f32 0.0, %v704
    %v706 = vpop.f32.mrb[0].mxu0
    %v707 = vpop.f32.mrb[0].mxu0
    %v708 = vpop.f32.mrb[0].mxu0
    %709 = vdwg.mxu0
    %710 = vst.msk [vmem:[#allocation2 + $0x8] sm:$0xff] %vm143, %v705
    %711 = vrot.lane.b32.xlu0 %v600, 120
    %v712 = vpop.permute.xlu0 %711
    %713 = vrot.lane.b32.xlu0 %v600, 88
    %v714 = vpop.permute.xlu0 %713
    %v716 = vsel %vm143, %v712, 0
    %v719 = vsel %vm143, %v714, 0
    %721 = vmatprep.subr.bf16.mxu0 0
    %722 = vmatpush1.bf16.xpose.msra.mxu0 %v719
    %723 = vmatprep.subr.bf16.mxu0 0
    %724 = vmatpush1.bf16.xpose.msra.mxu0 0
    %725 = vmatprep.subr.bf16.mxu0 0
    %726 = vmatpush1.bf16.xpose.msra.mxu0 0
    %727 = vmatprep.subr.bf16.mxu0 0
    %728 = vmatpush1.bf16.xpose.msra.mxu0 0
    %729 = vmatprep.subr.bf16.mxu0 0
    %730 = vmatpush1.bf16.xpose.msra.mxu0 0
    %731 = vmatprep.subr.bf16.mxu0 0
    %732 = vmatpush1.bf16.xpose.msra.mxu0 0
    %733 = vmatprep.subr.bf16.mxu0 0
    %734 = vmatpush1.bf16.xpose.msra.mxu0 0
    %735 = vmatprep.subr.bf16.mxu0 0
    %736 = vmatpush1.bf16.xpose.msra.mxu0 0
    %737 = vmatprep.subr.bf16.mxu0 0
    %738 = vmatpush1.bf16.xpose.msra.mxu0 0
    %739 = vmatprep.subr.bf16.mxu0 0
    %740 = vmatpush1.bf16.xpose.msra.mxu0 0
    %741 = vmatprep.subr.bf16.mxu0 0
    %742 = vmatpush1.bf16.xpose.msra.mxu0 0
    %743 = vmatprep.subr.bf16.mxu0 0
    %744 = vmatpush1.bf16.xpose.msra.mxu0 0
    %745 = vmatprep.subr.bf16.mxu0 0
    %746 = vmatpush1.bf16.xpose.msra.mxu0 0
    %747 = vmatprep.subr.bf16.mxu0 0
    %748 = vmatpush1.bf16.xpose.msra.mxu0 0
    %749 = vmatprep.subr.bf16.mxu0 0
    %750 = vmatpush1.bf16.xpose.msra.mxu0 0
    %751 = vmatprep.subr.bf16.mxu0 0
    %752 = vmatpush1.bf16.xpose.msra.mxu0 0
    %753 = vmatprep.mubr.bf16.mxu0 0
    %754 = vmatmul.mubr.bf16.gmra.mrb[0].mxu0 %v716
    %v755 = vpop.f32.mrb[0].mxu0
    %v756 = vadd.f32 0.0, %v755
    %v757 = vpop.f32.mrb[0].mxu0
    %v758 = vpop.f32.mrb[0].mxu0
    %v759 = vpop.f32.mrb[0].mxu0
    %760 = vdwg.mxu0
    %v761 = vsel %vm143, %v756, -inf
    %762 = vmax.xlane.f32.xlu0 %v761
    %v763 = vpop.xlane.xlu0 %762
    %v764 = vsub.f32 %v756, %v763
    %v765 = vmul.f32 %v764, 1.442695
    %v766 = vpow.pop %v765
    %v767 = vsel %vm143, %v766, 0.0
    %768 = vadd.xlane.f32.xlu0 %v767
    %v769 = vpop.xlane.xlu0 %768
    %v770 = vrcp.pop %v769
    %v771 = vmul.f32 %v766, %v770
    %v772 = vpack.c.bf16 %v771, %v771
    %773 = vrot.lane.b32.xlu0 %v600, 56
    %v774 = vpop.permute.xlu0 %773
    %v776 = vsel %vm143, %v772, 0
    %v779 = vsel %vm207, %v774, 0
    %781 = vmatprep.subr.bf16.mxu0 0
    %782 = vmatpush1.bf16.msra.mxu0 %v779
    %783 = vmatprep.subr.bf16.mxu0 0
    %784 = vmatpush1.bf16.msra.mxu0 0
    %785 = vmatprep.subr.bf16.mxu0 0
    %786 = vmatpush1.bf16.msra.mxu0 0
    %787 = vmatprep.subr.bf16.mxu0 0
    %788 = vmatpush1.bf16.msra.mxu0 0
    %789 = vmatprep.subr.bf16.mxu0 0
    %790 = vmatpush1.bf16.msra.mxu0 0
    %791 = vmatprep.subr.bf16.mxu0 0
    %792 = vmatpush1.bf16.msra.mxu0 0
    %793 = vmatprep.subr.bf16.mxu0 0
    %794 = vmatpush1.bf16.msra.mxu0 0
    %795 = vmatprep.subr.bf16.mxu0 0
    %796 = vmatpush1.bf16.msra.mxu0 0
    %797 = vmatprep.subr.bf16.mxu0 0
    %798 = vmatpush1.bf16.msra.mxu0 0
    %799 = vmatprep.subr.bf16.mxu0 0
    %800 = vmatpush1.bf16.msra.mxu0 0
    %801 = vmatprep.subr.bf16.mxu0 0
    %802 = vmatpush1.bf16.msra.mxu0 0
    %803 = vmatprep.subr.bf16.mxu0 0
    %804 = vmatpush1.bf16.msra.mxu0 0
    %805 = vmatprep.subr.bf16.mxu0 0
    %806 = vmatpush1.bf16.msra.mxu0 0
    %807 = vmatprep.subr.bf16.mxu0 0
    %808 = vmatpush1.bf16.msra.mxu0 0
    %809 = vmatprep.subr.bf16.mxu0 0
    %810 = vmatpush1.bf16.msra.mxu0 0
    %811 = vmatprep.subr.bf16.mxu0 0
    %812 = vmatpush1.bf16.msra.mxu0 0
    %813 = vmatprep.mubr.bf16.mxu0 0
    %814 = vmatmul.mubr.bf16.gmra.mrb[0].mxu0 %v776
    %v815 = vpop.f32.mrb[0].mxu0
    %v816 = vadd.f32 0.0, %v815
    %v817 = vpop.f32.mrb[0].mxu0
    %v818 = vpop.f32.mrb[0].mxu0
    %v819 = vpop.f32.mrb[0].mxu0
    %820 = vdwg.mxu0
    %822 = vrot.lane.b32.xlu0 %v816, 8
    %v823 = vpop.permute.xlu0 %822
    %825 = vst.msk [vmem:[#allocation2 + $0x8] sm:$0xff] %vm366, %v823
    %826 = vrot.lane.b32.xlu0 %v600, 112
    %v827 = vpop.permute.xlu0 %826
    %828 = vrot.lane.b32.xlu0 %v600, 80
    %v829 = vpop.permute.xlu0 %828
    %v831 = vsel %vm143, %v827, 0
    %v834 = vsel %vm143, %v829, 0
    %836 = vmatprep.subr.bf16.mxu0 0
    %837 = vmatpush1.bf16.xpose.msra.mxu0 %v834
    %838 = vmatprep.subr.bf16.mxu0 0
    %839 = vmatpush1.bf16.xpose.msra.mxu0 0
    %840 = vmatprep.subr.bf16.mxu0 0
    %841 = vmatpush1.bf16.xpose.msra.mxu0 0
    %842 = vmatprep.subr.bf16.mxu0 0
    %843 = vmatpush1.bf16.xpose.msra.mxu0 0
    %844 = vmatprep.subr.bf16.mxu0 0
    %845 = vmatpush1.bf16.xpose.msra.mxu0 0
    %846 = vmatprep.subr.bf16.mxu0 0
    %847 = vmatpush1.bf16.xpose.msra.mxu0 0
    %848 = vmatprep.subr.bf16.mxu0 0
    %849 = vmatpush1.bf16.xpose.msra.mxu0 0
    %850 = vmatprep.subr.bf16.mxu0 0
    %851 = vmatpush1.bf16.xpose.msra.mxu0 0
    %852 = vmatprep.subr.bf16.mxu0 0
    %853 = vmatpush1.bf16.xpose.msra.mxu0 0
    %854 = vmatprep.subr.bf16.mxu0 0
    %855 = vmatpush1.bf16.xpose.msra.mxu0 0
    %856 = vmatprep.subr.bf16.mxu0 0
    %857 = vmatpush1.bf16.xpose.msra.mxu0 0
    %858 = vmatprep.subr.bf16.mxu0 0
    %859 = vmatpush1.bf16.xpose.msra.mxu0 0
    %860 = vmatprep.subr.bf16.mxu0 0
    %861 = vmatpush1.bf16.xpose.msra.mxu0 0
    %862 = vmatprep.subr.bf16.mxu0 0
    %863 = vmatpush1.bf16.xpose.msra.mxu0 0
    %864 = vmatprep.subr.bf16.mxu0 0
    %865 = vmatpush1.bf16.xpose.msra.mxu0 0
    %866 = vmatprep.subr.bf16.mxu0 0
    %867 = vmatpush1.bf16.xpose.msra.mxu0 0
    %868 = vmatprep.mubr.bf16.mxu0 0
    %869 = vmatmul.mubr.bf16.gmra.mrb[0].mxu0 %v831
    %v870 = vpop.f32.mrb[0].mxu0
    %v871 = vadd.f32 0.0, %v870
    %v872 = vpop.f32.mrb[0].mxu0
    %v873 = vpop.f32.mrb[0].mxu0
    %v874 = vpop.f32.mrb[0].mxu0
    %875 = vdwg.mxu0
    %v876 = vsel %vm143, %v871, -inf
    %877 = vmax.xlane.f32.xlu0 %v876
    %v878 = vpop.xlane.xlu0 %877
    %v879 = vsub.f32 %v871, %v878
    %v880 = vmul.f32 %v879, 1.442695
    %v881 = vpow.pop %v880
    %v882 = vsel %vm143, %v881, 0.0
    %883 = vadd.xlane.f32.xlu0 %v882
    %v884 = vpop.xlane.xlu0 %883
    %v885 = vrcp.pop %v884
    %v886 = vmul.f32 %v881, %v885
    %v887 = vpack.c.bf16 %v886, %v886
    %888 = vrot.lane.b32.xlu0 %v600, 48
    %v889 = vpop.permute.xlu0 %888
    %v891 = vsel %vm143, %v887, 0
    %v894 = vsel %vm207, %v889, 0
    %896 = vmatprep.subr.bf16.mxu0 0
    %897 = vmatpush1.bf16.msra.mxu0 %v894
    %898 = vmatprep.subr.bf16.mxu0 0
    %899 = vmatpush1.bf16.msra.mxu0 0
    %900 = vmatprep.subr.bf16.mxu0 0
    %901 = vmatpush1.bf16.msra.mxu0 0
    %902 = vmatprep.subr.bf16.mxu0 0
    %903 = vmatpush1.bf16.msra.mxu0 0
    %904 = vmatprep.subr.bf16.mxu0 0
    %905 = vmatpush1.bf16.msra.mxu0 0
    %906 = vmatprep.subr.bf16.mxu0 0
    %907 = vmatpush1.bf16.msra.mxu0 0
    %908 = vmatprep.subr.bf16.mxu0 0
    %909 = vmatpush1.bf16.msra.mxu0 0
    %910 = vmatprep.subr.bf16.mxu0 0
    %911 = vmatpush1.bf16.msra.mxu0 0
    %912 = vmatprep.subr.bf16.mxu0 0
    %913 = vmatpush1.bf16.msra.mxu0 0
    %914 = vmatprep.subr.bf16.mxu0 0
    %915 = vmatpush1.bf16.msra.mxu0 0
    %916 = vmatprep.subr.bf16.mxu0 0
    %917 = vmatpush1.bf16.msra.mxu0 0
    %918 = vmatprep.subr.bf16.mxu0 0
    %919 = vmatpush1.bf16.msra.mxu0 0
    %920 = vmatprep.subr.bf16.mxu0 0
    %921 = vmatpush1.bf16.msra.mxu0 0
    %922 = vmatprep.subr.bf16.mxu0 0
    %923 = vmatpush1.bf16.msra.mxu0 0
    %924 = vmatprep.subr.bf16.mxu0 0
    %925 = vmatpush1.bf16.msra.mxu0 0
    %926 = vmatprep.subr.bf16.mxu0 0
    %927 = vmatpush1.bf16.msra.mxu0 0
    %928 = vmatprep.mubr.bf16.mxu0 0
    %929 = vmatmul.mubr.bf16.gmra.mrb[0].mxu0 %v891
    %v930 = vpop.f32.mrb[0].mxu0
    %v931 = vadd.f32 0.0, %v930
    %v932 = vpop.f32.mrb[0].mxu0
    %v933 = vpop.f32.mrb[0].mxu0
    %v934 = vpop.f32.mrb[0].mxu0
    %935 = vdwg.mxu0
    %937 = vrot.lane.b32.xlu0 %v931, 16
    %v938 = vpop.permute.xlu0 %937
    %940 = vst.msk [vmem:[#allocation2 + $0x8] sm:$0xff] %vm482, %v938
    %941 = vrot.lane.b32.xlu0 %v600, 104
    %v942 = vpop.permute.xlu0 %941
    %943 = vrot.lane.b32.xlu0 %v600, 72
    %v944 = vpop.permute.xlu0 %943
    %v946 = vsel %vm143, %v942, 0
    %v949 = vsel %vm143, %v944, 0
    %951 = vmatprep.subr.bf16.mxu0 0
    %952 = vmatpush1.bf16.xpose.msra.mxu0 %v949
    %953 = vmatprep.subr.bf16.mxu0 0
    %954 = vmatpush1.bf16.xpose.msra.mxu0 0
    %955 = vmatprep.subr.bf16.mxu0 0
    %956 = vmatpush1.bf16.xpose.msra.mxu0 0
    %957 = vmatprep.subr.bf16.mxu0 0
    %958 = vmatpush1.bf16.xpose.msra.mxu0 0
    %959 = vmatprep.subr.bf16.mxu0 0
    %960 = vmatpush1.bf16.xpose.msra.mxu0 0
    %961 = vmatprep.subr.bf16.mxu0 0
    %962 = vmatpush1.bf16.xpose.msra.mxu0 0
    %963 = vmatprep.subr.bf16.mxu0 0
    %964 = vmatpush1.bf16.xpose.msra.mxu0 0
    %965 = vmatprep.subr.bf16.mxu0 0
    %966 = vmatpush1.bf16.xpose.msra.mxu0 0
    %967 = vmatprep.subr.bf16.mxu0 0
    %968 = vmatpush1.bf16.xpose.msra.mxu0 0
    %969 = vmatprep.subr.bf16.mxu0 0
    %970 = vmatpush1.bf16.xpose.msra.mxu0 0
    %971 = vmatprep.subr.bf16.mxu0 0
    %972 = vmatpush1.bf16.xpose.msra.mxu0 0
    %973 = vmatprep.subr.bf16.mxu0 0
    %974 = vmatpush1.bf16.xpose.msra.mxu0 0
    %975 = vmatprep.subr.bf16.mxu0 0
    %976 = vmatpush1.bf16.xpose.msra.mxu0 0
    %977 = vmatprep.subr.bf16.mxu0 0
    %978 = vmatpush1.bf16.xpose.msra.mxu0 0
    %979 = vmatprep.subr.bf16.mxu0 0
    %980 = vmatpush1.bf16.xpose.msra.mxu0 0
    %981 = vmatprep.subr.bf16.mxu0 0
    %982 = vmatpush1.bf16.xpose.msra.mxu0 0
    %983 = vmatprep.mubr.bf16.mxu0 0
    %984 = vmatmul.mubr.bf16.gmra.mrb[0].mxu0 %v946
    %v985 = vpop.f32.mrb[0].mxu0
    %v986 = vadd.f32 0.0, %v985
    %v987 = vpop.f32.mrb[0].mxu0
    %v988 = vpop.f32.mrb[0].mxu0
    %v989 = vpop.f32.mrb[0].mxu0
    %990 = vdwg.mxu0
    %v991 = vsel %vm143, %v986, -inf
    %992 = vmax.xlane.f32.xlu0 %v991
    %v993 = vpop.xlane.xlu0 %992
    %v994 = vsub.f32 %v986, %v993
    %v995 = vmul.f32 %v994, 1.442695
    %v996 = vpow.pop %v995
    %v997 = vsel %vm143, %v996, 0.0
    %998 = vadd.xlane.f32.xlu0 %v997
    %v999 = vpop.xlane.xlu0 %998
    %v1000 = vrcp.pop %v999
    %v1001 = vmul.f32 %v996, %v1000
    %v1002 = vpack.c.bf16 %v1001, %v1001
    %1003 = vrot.lane.b32.xlu0 %v600, 40
    %v1004 = vpop.permute.xlu0 %1003
    %v1006 = vsel %vm143, %v1002, 0
    %v1009 = vsel %vm207, %v1004, 0
    %1011 = vmatprep.subr.bf16.mxu0 0
    %1012 = vmatpush1.bf16.msra.mxu0 %v1009
    %1013 = vmatprep.subr.bf16.mxu0 0
    %1014 = vmatpush1.bf16.msra.mxu0 0
    %1015 = vmatprep.subr.bf16.mxu0 0
    %1016 = vmatpush1.bf16.msra.mxu0 0
    %1017 = vmatprep.subr.bf16.mxu0 0
    %1018 = vmatpush1.bf16.msra.mxu0 0
    %1019 = vmatprep.subr.bf16.mxu0 0
    %1020 = vmatpush1.bf16.msra.mxu0 0
    %1021 = vmatprep.subr.bf16.mxu0 0
    %1022 = vmatpush1.bf16.msra.mxu0 0
    %1023 = vmatprep.subr.bf16.mxu0 0
    %1024 = vmatpush1.bf16.msra.mxu0 0
    %1025 = vmatprep.subr.bf16.mxu0 0
    %1026 = vmatpush1.bf16.msra.mxu0 0
    %1027 = vmatprep.subr.bf16.mxu0 0
    %1028 = vmatpush1.bf16.msra.mxu0 0
    %1029 = vmatprep.subr.bf16.mxu0 0
    %1030 = vmatpush1.bf16.msra.mxu0 0
    %1031 = vmatprep.subr.bf16.mxu0 0
    %1032 = vmatpush1.bf16.msra.mxu0 0
    %1033 = vmatprep.subr.bf16.mxu0 0
    %1034 = vmatpush1.bf16.msra.mxu0 0
    %1035 = vmatprep.subr.bf16.mxu0 0
    %1036 = vmatpush1.bf16.msra.mxu0 0
    %1037 = vmatprep.subr.bf16.mxu0 0
    %1038 = vmatpush1.bf16.msra.mxu0 0
    %1039 = vmatprep.subr.bf16.mxu0 0
    %1040 = vmatpush1.bf16.msra.mxu0 0
    %1041 = vmatprep.subr.bf16.mxu0 0
    %1042 = vmatpush1.bf16.msra.mxu0 0
    %1043 = vmatprep.mubr.bf16.mxu0 0
    %1044 = vmatmul.mubr.bf16.gmra.mrb[0].mxu0 %v1006
    %v1045 = vpop.f32.mrb[0].mxu0
    %v1046 = vadd.f32 0.0, %v1045
    %v1047 = vpop.f32.mrb[0].mxu0
    %v1048 = vpop.f32.mrb[0].mxu0
    %v1049 = vpop.f32.mrb[0].mxu0
    %1050 = vdwg.mxu0
    %1052 = vrot.lane.b32.xlu0 %v1046, 24
    %v1053 = vpop.permute.xlu0 %1052
    %1055 = vst.msk [vmem:[#allocation2 + $0x8] sm:$0xff] %vm598, %v1053
    %v1056 = vld [vmem:[#allocation2] sm:$0xff]
    %v1057 = vld [vmem:[#allocation2 + $0x8] sm:$0xff]
    %v1058 = vpack.c.bf16 %v1057, %v1056
    %v1060 = vlaneseq
    %v1061 = vshrl.u32 %v1060, 7
    %v1062 = vsub.s32 0, %v1061
    %v1063 = vrot.slane %v138, %v1062
    %v1069 = vunpack.c.l.b16 %v134
    %v1070 = vunpack.c.l.b16 %v135
    %v1071 = vunpack.c.l.b16 %v136
    %v1072 = vunpack.c.l.b16 %v137
    %v1073 = vpack.c.b16 %v1070, %v1069
    %v1074 = vpack.c.b16 %v1072, %v1071
    %v1078 = vsel %vm89, %v1058, 0
    %1080 = vmatprep.subr.bf16.mxu0 0
    %1081 = vmatpush1.bf16.msra.mxu0 %v1073
    %1082 = vmatprep.subr.bf16.mxu0 0
    %1083 = vmatpush1.bf16.msra.mxu0 %v1074
    %1084 = vmatprep.subr.bf16.mxu0 0
    %1085 = vmatpush1.bf16.msra.mxu0 0
    %1086 = vmatprep.subr.bf16.mxu0 0
    %1087 = vmatpush1.bf16.msra.mxu0 0
    %1088 = vmatprep.subr.bf16.mxu0 0
    %1089 = vmatpush1.bf16.msra.mxu0 0
    %1090 = vmatprep.subr.bf16.mxu0 0
    %1091 = vmatpush1.bf16.msra.mxu0 0
    %1092 = vmatprep.subr.bf16.mxu0 0
    %1093 = vmatpush1.bf16.msra.mxu0 0
    %1094 = vmatprep.subr.bf16.mxu0 0
    %1095 = vmatpush1.bf16.msra.mxu0 0
    %1096 = vmatprep.subr.bf16.mxu0 0
    %1097 = vmatpush1.bf16.msra.mxu0 0
    %1098 = vmatprep.subr.bf16.mxu0 0
    %1099 = vmatpush1.bf16.msra.mxu0 0
    %1100 = vmatprep.subr.bf16.mxu0 0
    %1101 = vmatpush1.bf16.msra.mxu0 0
    %1102 = vmatprep.subr.bf16.mxu0 0
    %1103 = vmatpush1.bf16.msra.mxu0 0
    %1104 = vmatprep.subr.bf16.mxu0 0
    %1105 = vmatpush1.bf16.msra.mxu0 0
    %1106 = vmatprep.subr.bf16.mxu0 0
    %1107 = vmatpush1.bf16.msra.mxu0 0
    %1108 = vmatprep.subr.bf16.mxu0 0
    %1109 = vmatpush1.bf16.msra.mxu0 0
    %1110 = vmatprep.subr.bf16.mxu0 0
    %1111 = vmatpush1.bf16.msra.mxu0 0
    %1112 = vmatprep.mubr.bf16.mxu0 0
    %1113 = vmatmul.mubr.bf16.gmra.mrb[0].mxu0 %v1078
    %v1114 = vpop.f32.mrb[0].mxu0
    %v1115 = vadd.f32 %v1063, %v1114
    %v1116 = vpop.f32.mrb[0].mxu0
    %v1117 = vpop.f32.mrb[0].mxu0
    %v1118 = vadd.f32 %v1063, %v1117
    %v1119 = vpop.f32.mrb[0].mxu0
    %1120 = vdwg.mxu0
    %1121 = vst.msk [vmem:[#allocation9] sm:$0xff] %vm89, %v1115
    %1122 = vst.msk [vmem:[#allocation9 + $0x8] sm:$0xff] %vm89, %v1118
    // Predicated region
    $region34: #{tpu_custom_call.1} parent=1 // pred_check
      _
    $region35: #{tpu_custom_call.1} parent=1 // pred_check_branch
      %1124 = sbr.rel (0) target = $region37
    $region36: #{tpu_custom_call.1} parent=1 // pred_region
      %s1126 = ssub.s32 256, 256
      %1127 = vsyncadd [#allocation5], %s1126
      %s1128 = sshll.u32 [#allocation9], 4
      %s1129 = int_to_ptr.vmem [resolvable:$true] %s1128
      %1134 = dma.vmem_to_hbm [thread:$0]  %s1129, 256, %s5, [#allocation5], 128, 128, 8
    $region37: #{tpu_custom_call.1} parent=1 // pred_fallthru
      _
    // Predicated region
    $region38: #{tpu_custom_call.1} parent=1 // pred_check
      _
    $region39: #{tpu_custom_call.1} parent=1 // pred_check_branch
      %1136 = sbr.rel (0) target = $region41
    $region40: #{tpu_custom_call.1} parent=1 // pred_region
      %1137 = dma.done [#allocation5], 256
    $region41: #{tpu_custom_call.1} parent=1 // pred_fallthru
      _
    %1138 = vsyncpa [#allocation4], 1
    %1139 = vsyncpa [#allocation7], 1
    %1140 = vsyncpa [#allocation5], 1

</llo_original>
